<compile_context>
chip_gen: v7x
topology: tpu7x:2x2x1
jax: 0.10.0
libtpu: 0.0.40
codegen_flags: <defaults>
</compile_context>

<pallas_src>
import functools

import numpy as np
import jax
import jax.numpy as jnp
from jax.experimental import pallas as pl
from jax.experimental.pallas import tpu as pltpu

TWOPI = 2.0 * np.pi
LANE = 128


def default_model_kernel(t_ref, x_ref, p_ref, o_ref, *, y_n, m_n, d, low, high, alpha):
    """One lane-dense tile: t_ref (rows,128), x_ref (d,rows,128), o_ref (rows,128).

    Packed SMEM parameter layout (float32):
      [0]                      yearly base angular frequency  2*pi*scale/y_p
      [1]                      monthly base angular frequency 2*pi*scale/m_p
      [2        : 2+y_n      ] yearly cos weights
      [2+y_n    : 2+2*y_n    ] yearly sin weights
      [2+2*y_n  : ..+m_n     ] monthly cos weights
      [..       : ..+m_n     ] monthly sin weights
      [..       : ..+d       ] LinearX weights
      [-2], [-1]               trend w, b
    """
    t = t_ref[...]                                   # (rows, 128), time on lanes

    def fourier(base_idx, w_off, n):
        # cos/sin of the base angle once (EUP); higher harmonics via the exact
        # angle-addition recurrence (VPU FMAs).  Weights/freqs read as SMEM scalars.
        theta = t * p_ref[base_idx]
        c1 = jnp.cos(theta)
        s1 = jnp.sin(theta)
        ck, sk = c1, s1
        acc = p_ref[w_off] * ck + p_ref[w_off + n] * sk
        for k in range(1, n):
            ck, sk = ck * c1 - sk * s1, sk * c1 + ck * s1
            acc = acc + p_ref[w_off + k] * ck + p_ref[w_off + n + k] * sk
        return acc

    season = fourier(0, 2, y_n) + fourier(1, 2 + 2 * y_n, m_n)
    # (weekly block has n=0 by default -> contributes 0)

    # LinearX: x is pre-transposed to (d, time) -> d lane-dense FMAs, no cross-lane reduce.
    x_off = 2 + 2 * y_n + 2 * m_n
    lin = p_ref[x_off] * x_ref[0]
    for j in range(1, d):
        lin = lin + p_ref[x_off + j] * x_ref[j]

    # Trend (breakpoints=None): w*t + b with scalars from SMEM.
    pred = season + lin + p_ref[x_off + d] * t + p_ref[x_off + d + 1]

    # Squasher: functional form of the in-place masked assignments.
    if low is not None:
        pred = jnp.where(pred < low, alpha * (pred - low) + low, pred)
    if high is not None:
        pred = jnp.where(pred > high, alpha * (pred - high) + high, pred)

    o_ref[...] = pred


def pack_params(wy, wm, wx, trend_w, trend_b, *, y_p=365.25, m_p=30.5, scale=1.0):
    """Pack all DefaultModel parameters into one small f32 vector for SMEM."""
    base = jnp.array([TWOPI * scale / y_p, TWOPI * scale / m_p], dtype=jnp.float32)
    return jnp.concatenate([
        base,
        jnp.asarray(wy, jnp.float32).reshape(-1),   # [cos weights..., sin weights...] yearly
        jnp.asarray(wm, jnp.float32).reshape(-1),   # [cos weights..., sin weights...] monthly
        jnp.asarray(wx, jnp.float32).reshape(-1),   # LinearX weights
        jnp.array([trend_w, trend_b], dtype=jnp.float32),
    ])


def default_model_forward(t, x, packed_params, *, y_n, m_n, d,
                          low=None, high=None, alpha=0.01, tile_t=2048):
    """t: (T,1) f32, x: (T,d) f32, packed_params: 1-D f32 (see kernel docstring)."""
    T = t.shape[0]
    assert x.shape == (T, d) and d >= 1

    # Lane-dense layout: time on the 128-lane axis; pad T to a multiple of the tile.
    T_128 = pl.cdiv(T, LANE) * LANE
    tile_t = max(LANE, min((tile_t // LANE) * LANE, T_128))
    T_pad = pl.cdiv(T_128, tile_t) * tile_t
    rows = T_pad // LANE
    tile_rows = tile_t // LANE
    n_tiles = T_pad // tile_t

    t2d = jnp.pad(t.reshape(-1).astype(jnp.float32), (0, T_pad - T)).reshape(rows, LANE)
    x3d = jnp.pad(x.astype(jnp.float32).T, ((0, 0), (0, T_pad - T))).reshape(d, rows, LANE)

    kernel = functools.partial(default_model_kernel, y_n=y_n, m_n=m_n, d=d,
                               low=low, high=high, alpha=alpha)

    out2d = pl.pallas_call(
        kernel,
        out_shape=jax.ShapeDtypeStruct((rows, LANE), jnp.float32),
        grid=(n_tiles,),
        in_specs=[
            pl.BlockSpec((tile_rows, LANE), lambda i: (i, 0)),        # t, time on lanes
            pl.BlockSpec((d, tile_rows, LANE), lambda i: (0, i, 0)),  # x^T, features leading
            pl.BlockSpec(memory_space=pltpu.MemorySpace.SMEM),        # packed params
        ],
        out_specs=pl.BlockSpec((tile_rows, LANE), lambda i: (i, 0)),  # lane-dense output
        compiler_params=pltpu.CompilerParams(dimension_semantics=("parallel",)),
    )(t2d, x3d, packed_params)

    return out2d.reshape(T_pad)[:T, None]


if __name__ == "__main__":
    # --- configuration consistent with DefaultModel(__init__) defaults ---
    T, D = 4096, 4           # seq length, exogenous feature dim (moments['x'][0].shape[1])
    y_n, m_n = 7, 5          # yearly / monthly Fourier orders (w_n = 0 -> no weekly term)
    y_p, m_p = 365.25, 30.5
    scale = 1.0              # moments['t'][1]
    mean_y, sd_y = 0.0, 1.0  # moments['y']
    l, h, alpha = -0.5, 0.5, 0.01
    low_n = (l - mean_y) / sd_y
    high_n = (h - mean_y) / sd_y

    # --- deterministic parameters / inputs ---
    key = jax.random.PRNGKey(0)
    k_x, k_wy, k_wm, k_wx = jax.random.split(key, 4)

    t = (jnp.arange(T, dtype=jnp.float32) * 0.05)[:, None]             # (T, 1) day-like values
    x = jax.random.normal(k_x, (T, D), dtype=jnp.float32)              # (T, D)

    wy = jax.random.normal(k_wy, (2 * y_n,), dtype=jnp.float32) * 0.1  # Linear(14,1) weight
    wm = jax.random.normal(k_wm, (2 * m_n,), dtype=jnp.float32) * 0.1  # Linear(10,1) weight
    wx = jax.random.normal(k_wx, (1, D), dtype=jnp.float32) * 0.1      # Linear(D,1) weight
    w_tr, b_tr = 0.01, 0.1                                             # Trend init_layer

    packed = pack_params(wy, wm, wx, w_tr, b_tr, y_p=y_p, m_p=m_p, scale=scale)

    out = default_model_forward(t, x, packed, y_n=y_n, m_n=m_n, d=D,
                                low=low_n, high=high_n, alpha=alpha, tile_t=2048)
    out = jax.block_until_ready(out)

    # --- pure-JAX reference (mirrors the PyTorch forward) ---
    def ref(t, x):
        ky = jnp.arange(1, y_n + 1, dtype=jnp.float32)
        km = jnp.arange(1, m_n + 1, dtype=jnp.float32)
        ang_y = TWOPI * ky * t / (y_p / scale)
        ang_m = TWOPI * km * t / (m_p / scale)
        season = (jnp.concatenate([jnp.cos(ang_y), jnp.sin(ang_y)], axis=1) @ wy[:, None]
                  + jnp.concatenate([jnp.cos(ang_m), jnp.sin(ang_m)], axis=1) @ wm[:, None])
        trend = t * w_tr + b_tr
        lin = x @ wx.T
        p = season + trend + lin
        p = jnp.where(p < low_n, alpha * (p - low_n) + low_n, p)
        p = jnp.where(p > high_n, alpha * (p - high_n) + high_n, p)
        return p

    r = jax.block_until_ready(ref(t, x))
    assert out.shape == (T, 1)
    # Tolerance note: the kernel evaluates higher harmonics via the (mathematically exact)
    # angle-addition recurrence from the base-angle cos/sin; at O(100-rad) f32 arguments this
    # equally valid rounding path differs from direct per-harmonic cos/sin by O(1e-4).
    np.testing.assert_allclose(np.asarray(out), np.asarray(r), rtol=5e-4, atol=5e-4)
    print("KERNEL_OK")
</pallas_src>

<mosaic_0001>
module attributes {stable_mosaic.version = 11 : i64} {
  func.func @default_model_kernel(%arg0: i32, %arg1: memref<16x128xf32, #tpu.memory_space<vmem>>, %arg2: memref<4x16x128xf32, #tpu.memory_space<vmem>>, %arg3: memref<32xf32, #tpu.memory_space<smem>>, %arg4: memref<16x128xf32, #tpu.memory_space<vmem>>) attributes {dimension_semantics = [#tpu.dimension_semantics<parallel>], iteration_bounds = array<i64: 2>, scalar_prefetch = 0 : i64, scratch_operands = 0 : i64, tpu.core_type = #tpu.core_type<tc>, window_params = [{transform_indices = @transform_0, window_bounds = array<i64: 16, 128>}, {transform_indices = @transform_1, window_bounds = array<i64: 4, 16, 128>}, {transform_indices = @transform_2, window_bounds = array<i64: 32>}, {transform_indices = @transform_3, window_bounds = array<i64: 16, 128>}]} {
    %c0 = arith.constant 0 : index
    %c0_0 = arith.constant 0 : index
    %0 = vector.load %arg1[%c0, %c0_0] : memref<16x128xf32, #tpu.memory_space<vmem>>, vector<16x128xf32>
    %c0_1 = arith.constant 0 : index
    %1 = memref.load %arg3[%c0_1] : memref<32xf32, #tpu.memory_space<smem>>
    %2 = vector.broadcast %1 : f32 to vector<16x128xf32>
    %3 = arith.mulf %0, %2 : vector<16x128xf32>
    %4 = math.cos %3 : vector<16x128xf32>
    %5 = math.sin %3 : vector<16x128xf32>
    %c2 = arith.constant 2 : index
    %6 = memref.load %arg3[%c2] : memref<32xf32, #tpu.memory_space<smem>>
    %7 = vector.broadcast %6 : f32 to vector<16x128xf32>
    %8 = arith.mulf %7, %4 : vector<16x128xf32>
    %c9 = arith.constant 9 : index
    %9 = memref.load %arg3[%c9] : memref<32xf32, #tpu.memory_space<smem>>
    %10 = vector.broadcast %9 : f32 to vector<16x128xf32>
    %11 = arith.mulf %10, %5 : vector<16x128xf32>
    %12 = arith.addf %8, %11 : vector<16x128xf32>
    %13 = arith.mulf %4, %4 : vector<16x128xf32>
    %14 = arith.mulf %5, %5 : vector<16x128xf32>
    %15 = arith.subf %13, %14 : vector<16x128xf32>
    %16 = arith.mulf %5, %4 : vector<16x128xf32>
    %17 = arith.mulf %4, %5 : vector<16x128xf32>
    %18 = arith.addf %16, %17 : vector<16x128xf32>
    %c3 = arith.constant 3 : index
    %19 = memref.load %arg3[%c3] : memref<32xf32, #tpu.memory_space<smem>>
    %20 = vector.broadcast %19 : f32 to vector<16x128xf32>
    %21 = arith.mulf %20, %15 : vector<16x128xf32>
    %22 = arith.addf %12, %21 : vector<16x128xf32>
    %c10 = arith.constant 10 : index
    %23 = memref.load %arg3[%c10] : memref<32xf32, #tpu.memory_space<smem>>
    %24 = vector.broadcast %23 : f32 to vector<16x128xf32>
    %25 = arith.mulf %24, %18 : vector<16x128xf32>
    %26 = arith.addf %22, %25 : vector<16x128xf32>
    %27 = arith.mulf %15, %4 : vector<16x128xf32>
    %28 = arith.mulf %18, %5 : vector<16x128xf32>
    %29 = arith.subf %27, %28 : vector<16x128xf32>
    %30 = arith.mulf %18, %4 : vector<16x128xf32>
    %31 = arith.mulf %15, %5 : vector<16x128xf32>
    %32 = arith.addf %30, %31 : vector<16x128xf32>
    %c4 = arith.constant 4 : index
    %33 = memref.load %arg3[%c4] : memref<32xf32, #tpu.memory_space<smem>>
    %34 = vector.broadcast %33 : f32 to vector<16x128xf32>
    %35 = arith.mulf %34, %29 : vector<16x128xf32>
    %36 = arith.addf %26, %35 : vector<16x128xf32>
    %c11 = arith.constant 11 : index
    %37 = memref.load %arg3[%c11] : memref<32xf32, #tpu.memory_space<smem>>
    %38 = vector.broadcast %37 : f32 to vector<16x128xf32>
    %39 = arith.mulf %38, %32 : vector<16x128xf32>
    %40 = arith.addf %36, %39 : vector<16x128xf32>
    %41 = arith.mulf %29, %4 : vector<16x128xf32>
    %42 = arith.mulf %32, %5 : vector<16x128xf32>
    %43 = arith.subf %41, %42 : vector<16x128xf32>
    %44 = arith.mulf %32, %4 : vector<16x128xf32>
    %45 = arith.mulf %29, %5 : vector<16x128xf32>
    %46 = arith.addf %44, %45 : vector<16x128xf32>
    %c5 = arith.constant 5 : index
    %47 = memref.load %arg3[%c5] : memref<32xf32, #tpu.memory_space<smem>>
    %48 = vector.broadcast %47 : f32 to vector<16x128xf32>
    %49 = arith.mulf %48, %43 : vector<16x128xf32>
    %50 = arith.addf %40, %49 : vector<16x128xf32>
    %c12 = arith.constant 12 : index
    %51 = memref.load %arg3[%c12] : memref<32xf32, #tpu.memory_space<smem>>
    %52 = vector.broadcast %51 : f32 to vector<16x128xf32>
    %53 = arith.mulf %52, %46 : vector<16x128xf32>
    %54 = arith.addf %50, %53 : vector<16x128xf32>
    %55 = arith.mulf %43, %4 : vector<16x128xf32>
    %56 = arith.mulf %46, %5 : vector<16x128xf32>
    %57 = arith.subf %55, %56 : vector<16x128xf32>
    %58 = arith.mulf %46, %4 : vector<16x128xf32>
    %59 = arith.mulf %43, %5 : vector<16x128xf32>
    %60 = arith.addf %58, %59 : vector<16x128xf32>
    %c6 = arith.constant 6 : index
    %61 = memref.load %arg3[%c6] : memref<32xf32, #tpu.memory_space<smem>>
    %62 = vector.broadcast %61 : f32 to vector<16x128xf32>
    %63 = arith.mulf %62, %57 : vector<16x128xf32>
    %64 = arith.addf %54, %63 : vector<16x128xf32>
    %c13 = arith.constant 13 : index
    %65 = memref.load %arg3[%c13] : memref<32xf32, #tpu.memory_space<smem>>
    %66 = vector.broadcast %65 : f32 to vector<16x128xf32>
    %67 = arith.mulf %66, %60 : vector<16x128xf32>
    %68 = arith.addf %64, %67 : vector<16x128xf32>
    %69 = arith.mulf %57, %4 : vector<16x128xf32>
    %70 = arith.mulf %60, %5 : vector<16x128xf32>
    %71 = arith.subf %69, %70 : vector<16x128xf32>
    %72 = arith.mulf %60, %4 : vector<16x128xf32>
    %73 = arith.mulf %57, %5 : vector<16x128xf32>
    %74 = arith.addf %72, %73 : vector<16x128xf32>
    %c7 = arith.constant 7 : index
    %75 = memref.load %arg3[%c7] : memref<32xf32, #tpu.memory_space<smem>>
    %76 = vector.broadcast %75 : f32 to vector<16x128xf32>
    %77 = arith.mulf %76, %71 : vector<16x128xf32>
    %78 = arith.addf %68, %77 : vector<16x128xf32>
    %c14 = arith.constant 14 : index
    %79 = memref.load %arg3[%c14] : memref<32xf32, #tpu.memory_space<smem>>
    %80 = vector.broadcast %79 : f32 to vector<16x128xf32>
    %81 = arith.mulf %80, %74 : vector<16x128xf32>
    %82 = arith.addf %78, %81 : vector<16x128xf32>
    %83 = arith.mulf %71, %4 : vector<16x128xf32>
    %84 = arith.mulf %74, %5 : vector<16x128xf32>
    %85 = arith.subf %83, %84 : vector<16x128xf32>
    %86 = arith.mulf %74, %4 : vector<16x128xf32>
    %87 = arith.mulf %71, %5 : vector<16x128xf32>
    %88 = arith.addf %86, %87 : vector<16x128xf32>
    %c8 = arith.constant 8 : index
    %89 = memref.load %arg3[%c8] : memref<32xf32, #tpu.memory_space<smem>>
    %90 = vector.broadcast %89 : f32 to vector<16x128xf32>
    %91 = arith.mulf %90, %85 : vector<16x128xf32>
    %92 = arith.addf %82, %91 : vector<16x128xf32>
    %c15 = arith.constant 15 : index
    %93 = memref.load %arg3[%c15] : memref<32xf32, #tpu.memory_space<smem>>
    %94 = vector.broadcast %93 : f32 to vector<16x128xf32>
    %95 = arith.mulf %94, %88 : vector<16x128xf32>
    %96 = arith.addf %92, %95 : vector<16x128xf32>
    %c1 = arith.constant 1 : index
    %97 = memref.load %arg3[%c1] : memref<32xf32, #tpu.memory_space<smem>>
    %98 = vector.broadcast %97 : f32 to vector<16x128xf32>
    %99 = arith.mulf %0, %98 : vector<16x128xf32>
    %100 = math.cos %99 : vector<16x128xf32>
    %101 = math.sin %99 : vector<16x128xf32>
    %c16 = arith.constant 16 : index
    %102 = memref.load %arg3[%c16] : memref<32xf32, #tpu.memory_space<smem>>
    %103 = vector.broadcast %102 : f32 to vector<16x128xf32>
    %104 = arith.mulf %103, %100 : vector<16x128xf32>
    %c21 = arith.constant 21 : index
    %105 = memref.load %arg3[%c21] : memref<32xf32, #tpu.memory_space<smem>>
    %106 = vector.broadcast %105 : f32 to vector<16x128xf32>
    %107 = arith.mulf %106, %101 : vector<16x128xf32>
    %108 = arith.addf %104, %107 : vector<16x128xf32>
    %109 = arith.mulf %100, %100 : vector<16x128xf32>
    %110 = arith.mulf %101, %101 : vector<16x128xf32>
    %111 = arith.subf %109, %110 : vector<16x128xf32>
    %112 = arith.mulf %101, %100 : vector<16x128xf32>
    %113 = arith.mulf %100, %101 : vector<16x128xf32>
    %114 = arith.addf %112, %113 : vector<16x128xf32>
    %c17 = arith.constant 17 : index
    %115 = memref.load %arg3[%c17] : memref<32xf32, #tpu.memory_space<smem>>
    %116 = vector.broadcast %115 : f32 to vector<16x128xf32>
    %117 = arith.mulf %116, %111 : vector<16x128xf32>
    %118 = arith.addf %108, %117 : vector<16x128xf32>
    %c22 = arith.constant 22 : index
    %119 = memref.load %arg3[%c22] : memref<32xf32, #tpu.memory_space<smem>>
    %120 = vector.broadcast %119 : f32 to vector<16x128xf32>
    %121 = arith.mulf %120, %114 : vector<16x128xf32>
    %122 = arith.addf %118, %121 : vector<16x128xf32>
    %123 = arith.mulf %111, %100 : vector<16x128xf32>
    %124 = arith.mulf %114, %101 : vector<16x128xf32>
    %125 = arith.subf %123, %124 : vector<16x128xf32>
    %126 = arith.mulf %114, %100 : vector<16x128xf32>
    %127 = arith.mulf %111, %101 : vector<16x128xf32>
    %128 = arith.addf %126, %127 : vector<16x128xf32>
    %c18 = arith.constant 18 : index
    %129 = memref.load %arg3[%c18] : memref<32xf32, #tpu.memory_space<smem>>
    %130 = vector.broadcast %129 : f32 to vector<16x128xf32>
    %131 = arith.mulf %130, %125 : vector<16x128xf32>
    %132 = arith.addf %122, %131 : vector<16x128xf32>
    %c23 = arith.constant 23 : index
    %133 = memref.load %arg3[%c23] : memref<32xf32, #tpu.memory_space<smem>>
    %134 = vector.broadcast %133 : f32 to vector<16x128xf32>
    %135 = arith.mulf %134, %128 : vector<16x128xf32>
    %136 = arith.addf %132, %135 : vector<16x128xf32>
    %137 = arith.mulf %125, %100 : vector<16x128xf32>
    %138 = arith.mulf %128, %101 : vector<16x128xf32>
    %139 = arith.subf %137, %138 : vector<16x128xf32>
    %140 = arith.mulf %128, %100 : vector<16x128xf32>
    %141 = arith.mulf %125, %101 : vector<16x128xf32>
    %142 = arith.addf %140, %141 : vector<16x128xf32>
    %c19 = arith.constant 19 : index
    %143 = memref.load %arg3[%c19] : memref<32xf32, #tpu.memory_space<smem>>
    %144 = vector.broadcast %143 : f32 to vector<16x128xf32>
    %145 = arith.mulf %144, %139 : vector<16x128xf32>
    %146 = arith.addf %136, %145 : vector<16x128xf32>
    %c24 = arith.constant 24 : index
    %147 = memref.load %arg3[%c24] : memref<32xf32, #tpu.memory_space<smem>>
    %148 = vector.broadcast %147 : f32 to vector<16x128xf32>
    %149 = arith.mulf %148, %142 : vector<16x128xf32>
    %150 = arith.addf %146, %149 : vector<16x128xf32>
    %151 = arith.mulf %139, %100 : vector<16x128xf32>
    %152 = arith.mulf %142, %101 : vector<16x128xf32>
    %153 = arith.subf %151, %152 : vector<16x128xf32>
    %154 = arith.mulf %142, %100 : vector<16x128xf32>
    %155 = arith.mulf %139, %101 : vector<16x128xf32>
    %156 = arith.addf %154, %155 : vector<16x128xf32>
    %c20 = arith.constant 20 : index
    %157 = memref.load %arg3[%c20] : memref<32xf32, #tpu.memory_space<smem>>
    %158 = vector.broadcast %157 : f32 to vector<16x128xf32>
    %159 = arith.mulf %158, %153 : vector<16x128xf32>
    %160 = arith.addf %150, %159 : vector<16x128xf32>
    %c25 = arith.constant 25 : index
    %161 = memref.load %arg3[%c25] : memref<32xf32, #tpu.memory_space<smem>>
    %162 = vector.broadcast %161 : f32 to vector<16x128xf32>
    %163 = arith.mulf %162, %156 : vector<16x128xf32>
    %164 = arith.addf %160, %163 : vector<16x128xf32>
    %165 = arith.addf %96, %164 : vector<16x128xf32>
    %c26 = arith.constant 26 : index
    %166 = memref.load %arg3[%c26] : memref<32xf32, #tpu.memory_space<smem>>
    %c0_2 = arith.constant 0 : index
    %c0_3 = arith.constant 0 : index
    %c0_4 = arith.constant 0 : index
    %167 = vector.load %arg2[%c0_2, %c0_3, %c0_4] : memref<4x16x128xf32, #tpu.memory_space<vmem>>, vector<1x16x128xf32>
    %168 = vector.shape_cast %167 : vector<1x16x128xf32> to vector<16x128xf32>
    %169 = vector.broadcast %166 : f32 to vector<16x128xf32>
    %170 = arith.mulf %169, %168 : vector<16x128xf32>
    %c27 = arith.constant 27 : index
    %171 = memref.load %arg3[%c27] : memref<32xf32, #tpu.memory_space<smem>>
    %c1_5 = arith.constant 1 : index
    %c0_6 = arith.constant 0 : index
    %c0_7 = arith.constant 0 : index
    %172 = vector.load %arg2[%c1_5, %c0_6, %c0_7] : memref<4x16x128xf32, #tpu.memory_space<vmem>>, vector<1x16x128xf32>
    %173 = vector.shape_cast %172 : vector<1x16x128xf32> to vector<16x128xf32>
    %174 = vector.broadcast %171 : f32 to vector<16x128xf32>
    %175 = arith.mulf %174, %173 : vector<16x128xf32>
    %176 = arith.addf %170, %175 : vector<16x128xf32>
    %c28 = arith.constant 28 : index
    %177 = memref.load %arg3[%c28] : memref<32xf32, #tpu.memory_space<smem>>
    %c2_8 = arith.constant 2 : index
    %c0_9 = arith.constant 0 : index
    %c0_10 = arith.constant 0 : index
    %178 = vector.load %arg2[%c2_8, %c0_9, %c0_10] : memref<4x16x128xf32, #tpu.memory_space<vmem>>, vector<1x16x128xf32>
    %179 = vector.shape_cast %178 : vector<1x16x128xf32> to vector<16x128xf32>
    %180 = vector.broadcast %177 : f32 to vector<16x128xf32>
    %181 = arith.mulf %180, %179 : vector<16x128xf32>
    %182 = arith.addf %176, %181 : vector<16x128xf32>
    %c29 = arith.constant 29 : index
    %183 = memref.load %arg3[%c29] : memref<32xf32, #tpu.memory_space<smem>>
    %c3_11 = arith.constant 3 : index
    %c0_12 = arith.constant 0 : index
    %c0_13 = arith.constant 0 : index
    %184 = vector.load %arg2[%c3_11, %c0_12, %c0_13] : memref<4x16x128xf32, #tpu.memory_space<vmem>>, vector<1x16x128xf32>
    %185 = vector.shape_cast %184 : vector<1x16x128xf32> to vector<16x128xf32>
    %186 = vector.broadcast %183 : f32 to vector<16x128xf32>
    %187 = arith.mulf %186, %185 : vector<16x128xf32>
    %188 = arith.addf %182, %187 : vector<16x128xf32>
    %189 = arith.addf %165, %188 : vector<16x128xf32>
    %c30 = arith.constant 30 : index
    %190 = memref.load %arg3[%c30] : memref<32xf32, #tpu.memory_space<smem>>
    %191 = vector.broadcast %190 : f32 to vector<16x128xf32>
    %192 = arith.mulf %191, %0 : vector<16x128xf32>
    %193 = arith.addf %189, %192 : vector<16x128xf32>
    %c31 = arith.constant 31 : index
    %194 = memref.load %arg3[%c31] : memref<32xf32, #tpu.memory_space<smem>>
    %195 = vector.broadcast %194 : f32 to vector<16x128xf32>
    %196 = arith.addf %193, %195 : vector<16x128xf32>
    %cst = arith.constant -5.000000e-01 : f32
    %197 = vector.broadcast %cst : f32 to vector<16x128xf32>
    %198 = arith.cmpf olt, %196, %197 : vector<16x128xf32>
    %cst_14 = arith.constant -5.000000e-01 : f32
    %199 = vector.broadcast %cst_14 : f32 to vector<16x128xf32>
    %200 = arith.subf %196, %199 : vector<16x128xf32>
    %cst_15 = arith.constant 0.00999999977 : f32
    %201 = vector.broadcast %cst_15 : f32 to vector<16x128xf32>
    %202 = arith.mulf %201, %200 : vector<16x128xf32>
    %cst_16 = arith.constant -5.000000e-01 : f32
    %203 = vector.broadcast %cst_16 : f32 to vector<16x128xf32>
    %204 = arith.addf %202, %203 : vector<16x128xf32>
    %205 = arith.select %198, %204, %196 : vector<16x128xi1>, vector<16x128xf32>
    %cst_17 = arith.constant 5.000000e-01 : f32
    %206 = vector.broadcast %cst_17 : f32 to vector<16x128xf32>
    %207 = arith.cmpf ogt, %205, %206 : vector<16x128xf32>
    %cst_18 = arith.constant 5.000000e-01 : f32
    %208 = vector.broadcast %cst_18 : f32 to vector<16x128xf32>
    %209 = arith.subf %205, %208 : vector<16x128xf32>
    %cst_19 = arith.constant 0.00999999977 : f32
    %210 = vector.broadcast %cst_19 : f32 to vector<16x128xf32>
    %211 = arith.mulf %210, %209 : vector<16x128xf32>
    %cst_20 = arith.constant 5.000000e-01 : f32
    %212 = vector.broadcast %cst_20 : f32 to vector<16x128xf32>
    %213 = arith.addf %211, %212 : vector<16x128xf32>
    %214 = arith.select %207, %213, %205 : vector<16x128xi1>, vector<16x128xf32>
    %c0_21 = arith.constant 0 : index
    %c0_22 = arith.constant 0 : index
    %215 = vector.load %arg4[%c0_21, %c0_22] : memref<16x128xf32, #tpu.memory_space<vmem>>, vector<16x128xf32>
    tpu.vector_store %arg4[%c0_21, %c0_22], %214 {strides = array<i32>} : memref<16x128xf32, #tpu.memory_space<vmem>>, vector<16x128xf32>,
    return
  }
  func.func @transform_0(%arg0: i32) -> (i32, i32) {
    %c0_i32 = arith.constant 0 : i32
    %c0_i32_0 = arith.constant 0 : i32
    return %arg0, %c0_i32 : i32, i32
  }
  func.func @transform_1(%arg0: i32) -> (i32, i32, i32) {
    %c0_i32 = arith.constant 0 : i32
    %c0_i32_0 = arith.constant 0 : i32
    %c0_i32_1 = arith.constant 0 : i32
    return %c0_i32, %arg0, %c0_i32_0 : i32, i32, i32
  }
  func.func @transform_2(%arg0: i32) -> i32 {
    %c0_i32 = arith.constant 0 : i32
    %c0_i32_0 = arith.constant 0 : i32
    return %c0_i32 : i32
  }
  func.func @transform_3(%arg0: i32) -> (i32, i32) {
    %c0_i32 = arith.constant 0 : i32
    %c0_i32_0 = arith.constant 0 : i32
    return %arg0, %c0_i32 : i32, i32
  }
}

</mosaic_0001>

<llo_original>
// kernel: tpu_custom_call.1
$region0: #{tpu_custom_call.1}
  #allocation0 [shape = 'u32[]', space=smem, size = 0x4, offset = 0x4, fixed_abs, tag = 'smem constant byte address 0x4 - core index']
  #allocation1 [shape = 'u32[144,128]{1,0:T(1,128)}', space=vmem, size = 0x12000, scoped, tag = 'internal scratch']
  #allocation10 [shape = 's32[]', space=sflag, size = 0x4, offset = 0, fixed_abs, tag = 'sflag constant byte address 0x0 - dummy sync flag']
  %s0 = inlined_call_operand.hbm [shape: f32[32,128], index: 0, kind: input, shape index: {}]
  %s1 = inlined_call_operand.hbm [shape: f32[4,32,128], index: 1, kind: input, shape index: {}]
  %s2 = inlined_call_operand.vmem [shape: f32[32], index: 2, kind: input, shape index: {}]
  %s3 = inlined_call_operand.hbm [shape: f32[32,128], index: 3, kind: output, shape index: {}]
  %s4 = sld [smem:[#allocation0]]
  $region57: #{tpu_custom_call.1} parent=0
    _
  %s6 = ssub.s32 1, %s4
  %s7 = scalar_select 0, %s6, %s4
  $region1: #{tpu_custom_call.1} parent=0
    #allocation2 [shape = 'u8[16384]{0}', space=vmem, size = 0x4000, scoped, tag = 'input window, operand 0']
    #allocation3 [shape = 's32[2]{0}', space=sflag, size = 0x8, scoped, tag = 'scoped memory for tpu_custom_call.1']
    #allocation4 [shape = 's32[2]{0}', space=sflag, size = 0x8, scoped, tag = 'scoped memory for tpu_custom_call.1']
    #allocation5 [shape = 's32[2]{0}', space=sflag, size = 0x8, scoped, tag = 'scoped memory for tpu_custom_call.1']
    #allocation6 [shape = 'u8[65536]{0}', space=vmem, size = 0x10000, scoped, tag = 'input window, operand 1']
    #allocation7 [shape = 's32[2]{0}', space=sflag, size = 0x8, scoped, tag = 'scoped memory for tpu_custom_call.1']
    #allocation8 [shape = 'u8[512]{0}', space=smem, size = 0x200, scoped, tag = 'input window, operand 2, single buffered']
    #allocation9 [shape = 'u8[16384]{0}', space=vmem, size = 0x4000, scoped, tag = 'output window, operand 0']
    %8 = vsyncpa [#allocation3], 0
    %s9 = scalar_lea.sflag [#allocation3], 1
    %10 = vsyncpa %s9, 0
    %11 = vsyncpa [#allocation7], 0
    %s12 = scalar_lea.sflag [#allocation7], 1
    %13 = vsyncpa %s12, 0
    %14 = vsyncpa [#allocation5], 0
    %15 = vsyncpa [#allocation4], 0
    %s16 = scalar_lea.sflag [#allocation4], 1
    %17 = vsyncpa %s16, 0
    loop: start=0, step=1, limit=4
    $region2: #{tpu_custom_call.1} parent=1 // loop_pre_header
      _
    $region3: #{tpu_custom_call.1} parent=1 // loop_header
      %s19 = sphi 0, %s23
      %p20 = scmp.ge.s32.totalorder %s19, 4
      %s29 = sphi 0, %s31
      %s32 = sphi 0, %s29
      %s33 = sphi 0, %s32
      %s49 = sphi 0, %s33
      %s55 = sphi 0, %s57
      %s58 = sphi 0, %s55
      %s59 = sphi 0, %s58
      %s75 = sphi 0, %s59
      %s79 = sphi 0, %s79
      %s81 = sphi 0, %s79
      %s82 = sphi 0, %s81
      %s96 = sphi 0, %s82
      %s102 = sphi 0, %s104
      %s105 = sphi 0, %s102
      %s106 = sphi 0, %s105
      %s122 = sphi 0, %s106
    $region4: #{tpu_custom_call.1} parent=1 // loop_header_branch
      %22 = sbr.rel (%p20) target = $region8
    $region5: #{tpu_custom_call.1} parent=1 // loop_body
      %s24 = ssub.s32 %s19, 1
      %s25 = ssub.s32 %s19, 2
      %s26 = sadd.s32 %s19, 1
      %s27 = ssub.s32 %s19, %s26
      %p28 = scmp.eq.s32.totalorder %s27, 0
      %s30 = sadd.s32 %s29, 1
      %s31 = scalar_select %p28, %s29, %s30
      %p34 = pneg %p28
      %p35 = scmp.eq.s32.totalorder %s19, 1
      %p36 = por %p34, %p35
      %p37 = scmp.ne.s32.totalorder %s29, %s32
      %p38 = scmp.eq.s32.totalorder %s19, 0
      %p39 = por %p37, %p38
      %p40 = scmp.ne.s32.totalorder %s29, %s32
      %p41 = scmp.eq.s32.totalorder %s24, 1
      %p42 = por %p40, %p41
      %p43 = scmp.ne.s32.totalorder %s32, %s33
      %p44 = scmp.eq.s32.totalorder %s24, 0
      %p45 = por %p43, %p44
      %p46 = scmp.ne.s32.totalorder %s32, %s33
      %p47 = scmp.eq.s32.totalorder %s25, 1
      %p48 = por %p46, %p47
      %p50 = scmp.ne.s32.totalorder %s33, %s49
      %p51 = scmp.eq.s32.totalorder %s25, 0
      %p52 = por %p50, %p51
      %s53 = ssub.s32 %s19, %s26
      %p54 = scmp.eq.s32.totalorder %s53, 0
      %s56 = sadd.s32 %s55, 1
      %s57 = scalar_select %p54, %s55, %s56
      %p60 = pneg %p54
      %p61 = scmp.eq.s32.totalorder %s19, 1
      %p62 = por %p60, %p61
      %p63 = scmp.ne.s32.totalorder %s55, %s58
      %p64 = scmp.eq.s32.totalorder %s19, 0
      %p65 = por %p63, %p64
      %p66 = scmp.ne.s32.totalorder %s55, %s58
      %p67 = scmp.eq.s32.totalorder %s24, 1
      %p68 = por %p66, %p67
      %p69 = scmp.ne.s32.totalorder %s58, %s59
      %p70 = scmp.eq.s32.totalorder %s24, 0
      %p71 = por %p69, %p70
      %p72 = scmp.ne.s32.totalorder %s58, %s59
      %p73 = scmp.eq.s32.totalorder %s25, 1
      %p74 = por %p72, %p73
      %p76 = scmp.ne.s32.totalorder %s59, %s75
      %p77 = scmp.eq.s32.totalorder %s25, 0
      %p78 = por %p76, %p77
      %s80 = sadd.s32 %s79, 1
      %p83 = scmp.eq.s32.totalorder %s19, 1
      %p84 = scmp.ne.s32.totalorder %s79, %s81
      %p85 = scmp.eq.s32.totalorder %s19, 0
      %p86 = por %p84, %p85
      %p87 = scmp.ne.s32.totalorder %s79, %s81
      %p88 = scmp.eq.s32.totalorder %s24, 1
      %p89 = por %p87, %p88
      %p90 = scmp.ne.s32.totalorder %s81, %s82
      %p91 = scmp.eq.s32.totalorder %s24, 0
      %p92 = por %p90, %p91
      %p93 = scmp.ne.s32.totalorder %s81, %s82
      %p94 = scmp.eq.s32.totalorder %s25, 1
      %p95 = por %p93, %p94
      %p97 = scmp.ne.s32.totalorder %s82, %s96
      %p98 = scmp.eq.s32.totalorder %s25, 0
      %p99 = por %p97, %p98
      %s100 = ssub.s32 %s19, %s26
      %p101 = scmp.eq.s32.totalorder %s100, 0
      %s103 = sadd.s32 %s102, 1
      %s104 = scalar_select %p101, %s102, %s103
      %p107 = pneg %p101
      %p108 = scmp.eq.s32.totalorder %s19, 1
      %p109 = por %p107, %p108
      %p110 = scmp.ne.s32.totalorder %s102, %s105
      %p111 = scmp.eq.s32.totalorder %s19, 0
      %p112 = por %p110, %p111
      %p113 = scmp.ne.s32.totalorder %s102, %s105
      %p114 = scmp.eq.s32.totalorder %s24, 1
      %p115 = por %p113, %p114
      %p116 = scmp.ne.s32.totalorder %s105, %s106
      %p117 = scmp.eq.s32.totalorder %s24, 0
      %p118 = por %p116, %p117
      %p119 = scmp.ne.s32.totalorder %s105, %s106
      %p120 = scmp.eq.s32.totalorder %s25, 1
      %p121 = por %p119, %p120
      %p123 = scmp.ne.s32.totalorder %s106, %s122
      %p124 = scmp.eq.s32.totalorder %s25, 0
      %p125 = por %p123, %p124
      %p126 = scmp.le.s32.totalorder 1, %s19
      %p127 = scmp.lt.s32.totalorder %s19, 3
      %p128 = pnand %p126, %p127
      %p129 = pneg %p128
      // Predicated region
      $region9: #{tpu_custom_call.1} parent=5 // pred_check
        _
      $region10: #{tpu_custom_call.1} parent=5 // pred_check_branch
        %131 = sbr.rel (%p128) target = $region12
      $region11: #{tpu_custom_call.1} parent=5 // pred_region
        %s132 = ssub.s32 %s19, 1
        // Predicated region
        $region13: #{tpu_custom_call.1} parent=11 // pred_check
          %p133 = pneg %p92
        $region14: #{tpu_custom_call.1} parent=11 // pred_check_branch
          %135 = sbr.rel (%p133) target = $region16
        $region15: #{tpu_custom_call.1} parent=11 // pred_region
          %s137 = ssub.s32 16, 16
          %138 = vsyncadd [#allocation5], %s137
          %s140 = sshll.u32 %s2, 4
          %s141 = int_to_ptr.vmem [resolvable:$true] %s140
          %143 = dma.vmem_to_smem %s141, 16, [#allocation8], [#allocation5]
        $region16: #{tpu_custom_call.1} parent=11 // pred_fallthru
          _
      $region12: #{tpu_custom_call.1} parent=5 // pred_fallthru
        _
      %p144 = scmp.lt.s32.totalorder %s19, 2
      // Predicated region
      $region17: #{tpu_custom_call.1} parent=5 // pred_check
        %p145 = pneg %p144
      $region18: #{tpu_custom_call.1} parent=5 // pred_check_branch
        %147 = sbr.rel (%p145) target = $region20
      $region19: #{tpu_custom_call.1} parent=5 // pred_region
        // Predicated region
        $region21: #{tpu_custom_call.1} parent=19 // pred_check
          %p148 = pneg %p39
        $region22: #{tpu_custom_call.1} parent=19 // pred_check_branch
          %150 = sbr.rel (%p148) target = $region24
        $region23: #{tpu_custom_call.1} parent=19 // pred_region
          %s151 = sand.u32 %s29, 1
          %s152 = scalar_lea.sflag [#allocation3], %s151
          %s153 = sand.u32 %s29, 1
          %s154 = smul.addr %s153, 16
          %s155 = scalar_lea.vmem [#allocation2], %s154
          %s156 = smul.u32 2, %s19
          %s158 = ssub.s32 256, 256
          %159 = vsyncadd %s152, %s158
          %s160 = smul.addr %s156, 128
          %s161 = scalar_lea.hbm %s0, %s160
          %s162 = sshll.u32 %s155, 4
          %s163 = int_to_ptr.vmem [resolvable:$true] %s162
          %168 = dma.hbm_to_vmem [thread:$0]  %s161, 256, %s163, %s152, 128, 128, 8
        $region24: #{tpu_custom_call.1} parent=19 // pred_fallthru
          _
        // Predicated region
        $region25: #{tpu_custom_call.1} parent=19 // pred_check
          %p169 = pneg %p65
        $region26: #{tpu_custom_call.1} parent=19 // pred_check_branch
          %171 = sbr.rel (%p169) target = $region28
        $region27: #{tpu_custom_call.1} parent=19 // pred_region
          #allocation11 [shape = 'u32[6]{0}', space=smem, size = 0x18, scoped, tag = 'DMA stride descriptor']
          %s172 = sand.u32 %s55, 1
          %s173 = scalar_lea.sflag [#allocation7], %s172
          %s174 = sand.u32 %s55, 1
          %s175 = smul.addr %s174, 64
          %s176 = scalar_lea.vmem [#allocation6], %s175
          %s177 = smul.u32 2, %s19
          %s179 = ssub.s32 1024, 1024
          %180 = vsyncadd %s173, %s179
          %s181 = smul.addr %s177, 128
          %s182 = scalar_lea.hbm %s1, %s181
          %s184 = sshll.u32 1, 14
          %s185 = sxor.u32 4294967295, %s184
          %s187 = sld [smem:[#allocation0]]
          %s188 = sadd.s32 2, %s187
          %s190 = sshll.u32 7, 26
          %s191 = sxor.u32 4294967295, %s190
          %s192 = sand.u32 0, %s191
          %s193 = sshll.u32 %s188, 26
          %s194 = sor.u32 %s192, %s193
          %s195 = sshll.u32 %s176, 4
          %s196 = int_to_ptr.vmem [resolvable:$true] %s195
          %202 = sst [smem:[#allocation11]] 512
          %s203 = scalar_lea.smem [#allocation11], 1
          %204 = sst [smem:[%s203]] 256
          %s205 = scalar_lea.smem [#allocation11], 2
          %206 = sst [smem:[%s205]] 2
          %s207 = scalar_lea.smem [#allocation11], 3
          %208 = sst [smem:[%s207]] 128
          %s209 = scalar_lea.smem [#allocation11], 4
          %210 = sst [smem:[%s209]] 128
          %s211 = scalar_lea.smem [#allocation11], 5
          %212 = sst [smem:[%s211]] 8
          %214 = dma.general %s182, 1024, %s196, %s173, [#allocation10], [#allocation11], %s194, 0
        $region28: #{tpu_custom_call.1} parent=19 // pred_fallthru
          _
      $region20: #{tpu_custom_call.1} parent=5 // pred_fallthru
        _
      %p215 = scmp.le.s32.totalorder 1, %s19
      %p216 = scmp.lt.s32.totalorder %s19, 3
      %p217 = pnand %p215, %p216
      %p218 = pneg %p217
      // Predicated region
      $region29: #{tpu_custom_call.1} parent=5 // pred_check
        _
      $region30: #{tpu_custom_call.1} parent=5 // pred_check_branch
        %220 = sbr.rel (%p217) target = $region32
      $region31: #{tpu_custom_call.1} parent=5 // pred_region
        %s221 = ssub.s32 %s19, 1
        %s222 = sand.u32 %s32, 1
        %s223 = scalar_lea.sflag [#allocation3], %s222
        %s224 = sand.u32 %s32, 1
        %s225 = smul.addr %s224, 16
        %s226 = scalar_lea.vmem [#allocation2], %s225
        // Predicated region
        $region33: #{tpu_custom_call.1} parent=31 // pred_check
          %p227 = pneg %p45
        $region34: #{tpu_custom_call.1} parent=31 // pred_check_branch
          %229 = sbr.rel (%p227) target = $region36
        $region35: #{tpu_custom_call.1} parent=31 // pred_region
          %230 = dma.done %s223, 256
        $region36: #{tpu_custom_call.1} parent=31 // pred_fallthru
          _
        %s231 = sand.u32 %s58, 1
        %s232 = scalar_lea.sflag [#allocation7], %s231
        %s233 = sand.u32 %s58, 1
        %s234 = smul.addr %s233, 64
        %s235 = scalar_lea.vmem [#allocation6], %s234
        // Predicated region
        $region37: #{tpu_custom_call.1} parent=31 // pred_check
          %p236 = pneg %p71
        $region38: #{tpu_custom_call.1} parent=31 // pred_check_branch
          %238 = sbr.rel (%p236) target = $region40
        $region39: #{tpu_custom_call.1} parent=31 // pred_region
          %239 = dma.done %s232, 1024
        $region40: #{tpu_custom_call.1} parent=31 // pred_fallthru
          _
        // Predicated region
        $region41: #{tpu_custom_call.1} parent=31 // pred_check
          %p240 = pneg %p92
        $region42: #{tpu_custom_call.1} parent=31 // pred_check_branch
          %242 = sbr.rel (%p240) target = $region44
        $region43: #{tpu_custom_call.1} parent=31 // pred_region
          %243 = dma.done [#allocation5], 16
        $region44: #{tpu_custom_call.1} parent=31 // pred_fallthru
          _
        %244 = sfence
        %s245 = sand.u32 %s32, 1
        %s246 = scalar_lea.sflag [#allocation3], %s245
        %s247 = sand.u32 %s32, 1
        %s248 = smul.addr %s247, 16
        %s249 = scalar_lea.vmem [#allocation2], %s248
        %p250 = pneg %p45
        %p251 = pneg %p42
        %s252 = sand.u32 %s58, 1
        %s253 = scalar_lea.sflag [#allocation7], %s252
        %s254 = sand.u32 %s58, 1
        %s255 = smul.addr %s254, 64
        %s256 = scalar_lea.vmem [#allocation6], %s255
        %p257 = pneg %p71
        %p258 = pneg %p68
        %p259 = pneg %p92
        %p260 = pneg %p89
        %p261 = pneg %p118
        %p262 = pneg %p115
        %s263 = sand.u32 %s105, 1
        %s264 = scalar_lea.sflag [#allocation4], %s263
        %s265 = sand.u32 %s105, 1
        %s266 = smul.addr %s265, 16
        %s267 = scalar_lea.vmem [#allocation9], %s266
        %s268 = smul.u32 2, %s24
        %s269 = smul.u32 2, %s24
        %s270 = smul.u32 2, %s24
        %v271 = vld [vmem:[%s226] sm:$0xff]
        %v272 = vld [vmem:[%s226 + $0x8] sm:$0xff]
        %s273 = sld [smem:[#allocation8]]
        %v274 = vstv %s273
        %v275 = vmul.f32 %v271, %v274
        %v276 = vmul.f32 %v272, %v274
        %v277 = vand.u32 2147483647, %v275
        %vm278 = vcmp.le.f32.partialorder %v277, 0.7853982
        %vm279 = vcmp.lt.s32.totalorder %v275, 0
        %v280 = vand.u32 %v275, 2139095040
        %v281 = vshrl.u32 %v280, 23
        %v282 = vsub.s32 %v281, 127
        %v283 = vand.u32 2147483647, %v275
        %v284 = vand.u32 %v283, 8388607
        %v285 = vor.u32 %v284, 8388608
        %v286 = vsub.s32 0, %v285
        %v287 = vadd.s32 %v282, 1
        %vm288 = vcmp.gt.s32.totalorder %v287, 0
        %v289 = vsel %vm288, %v287, 0
        %v290 = vshrl.u32 %v289, 5
        %v291 = vand.u32 %v289, 31
        %v292 = vsub.s32 32, %v291
        %v293 = vshrl.u32 683565275, %v292
        %v294 = vshll.u32 683565275, %v291
        %v295 = vshrl.u32 2475754826, %v292
        %v296 = vor.u32 %v294, %v295
        %v297 = vshll.u32 2475754826, %v291
        %v298 = vshrl.u32 2131351028, %v292
        %v299 = vor.u32 %v297, %v298
        %v300 = vshll.u32 2131351028, %v291
        %v301 = vshrl.u32 2102212464, %v292
        %v302 = vor.u32 %v300, %v301
        %v303 = vshll.u32 2102212464, %v291
        %v304 = vshrl.u32 920167782, %v292
        %v305 = vor.u32 %v303, %v304
        %v306 = vshll.u32 920167782, %v291
        %v307 = vshrl.u32 1326507024, %v292
        %v308 = vor.u32 %v306, %v307
        %vm309 = vcmp.lt.s32.totalorder %v290, 1
        %vm310 = vcmp.lt.s32.totalorder %v290, 2
        %vm311 = vcmp.lt.s32.totalorder %v290, 3
        %vm312 = vcmp.lt.s32.totalorder %v290, 4
        %v313 = vsel %vm309, %v293, %v296
        %v314 = vsel %vm312, %v302, 2102212464
        %v315 = vsel %vm311, %v299, %v314
        %v316 = vsel %vm310, %v313, %v315
        %v317 = vsel %vm309, %v296, %v299
        %v318 = vsel %vm312, %v305, 920167782
        %v319 = vsel %vm311, %v302, %v318
        %v320 = vsel %vm310, %v317, %v319
        %v321 = vsel %vm309, %v299, %v302
        %v322 = vsel %vm312, %v308, 1326507024
        %v323 = vsel %vm311, %v305, %v322
        %v324 = vsel %vm310, %v321, %v323
        %v325 = vshll.u32 %v285, 8
        %v326 = vmul.u32.u64.compose %v325, %v324
        %v327 = vextract.low.u32 %v326
        %v328 = vextract.high.u32 %v326
        %v329 = vmul.u32.u64.compose %v325, %v320
        %v330 = vextract.low.u32 %v329
        %v331 = vextract.high.u32 %v329
        %v332 = vmul.u32 %v325, %v316
        %v333 = vadd.s32 %v328, %v330
        %vm334 = vc.u32 %v328, %v330
        %v335 = vadd.s32 %v331, 1
        %v336 = vsel %vm334, %v335, %v331
        %v337 = vadd.s32 %v332, %v336
        %v338 = vadd.s32 %v337, 536870912
        %v339 = vshrl.u32 %v338, 30
        %v340 = vshll.u32 %v339, 30
        %v341 = vsub.s32 %v337, %v340
        %vm342 = vcmp.lt.s32.totalorder %v341, 0
        %v343 = vsub.s32 0, %v341
        %v344 = vsel %vm342, %v343, %v341
        %v345 = vclz %v344
        %v346 = vsub.s32 %v345, 2
        %vm347 = vcmp.gt.s32.totalorder 0, %v346
        %v348 = vsel %vm347, 0, %v346
        %v349 = vsub.s32 32, %v348
        %v350 = vshll.u32 %v341, %v348
        %v351 = vshrl.u32 %v333, %v349
        %v352 = vor.u32 %v350, %v351
        %v353 = vsub.s32 4294967266, %v348
        %v354 = vadd.s32 %v353, 127
        %v355 = vshll.u32 %v354, 23
        %v356 = vor.u32 4788187, %v355
        %v357 = vand.u32 2147483647, %v356
        %v359 = vcvt.s32.f32 %v352
        %v360 = vmul.f32 %v359, %v357
        %v361 = vxor.u32 %v360, 2147483648
        %v362 = vsel %vm279, %v361, %v360
        %v363 = vsub.s32 4, %v339
        %v364 = vsel %vm279, %v363, %v339
        %v365 = vsel %vm278, %v275, %v362
        %v366 = vsel %vm278, 0, %v364
        %v367 = vcosq.f32.pop %v365
        %v368 = vsinq.f32.pop %v365
        %vm369 = vweird.f32 %v275
        %v370 = vand.u32 %v366, 3
        %vm371 = vcmp.lt.s32.totalorder %v370, 2
        %vm372 = vcmp.eq.s32.totalorder %v370, 0
        %v373 = vxor.u32 %v368, 2147483648
        %v374 = vsel %vm372, %v367, %v373
        %vm375 = vcmp.eq.s32.totalorder %v370, 2
        %v376 = vxor.u32 %v367, 2147483648
        %v377 = vsel %vm375, %v376, %v368
        %v378 = vsel %vm371, %v374, %v377
        %v379 = vsel %vm369, nan, %v378
        %v380 = vand.u32 2147483647, %v276
        %vm381 = vcmp.le.f32.partialorder %v380, 0.7853982
        %vm382 = vcmp.lt.s32.totalorder %v276, 0
        %v383 = vand.u32 %v276, 2139095040
        %v384 = vshrl.u32 %v383, 23
        %v385 = vsub.s32 %v384, 127
        %v386 = vand.u32 2147483647, %v276
        %v387 = vand.u32 %v386, 8388607
        %v388 = vor.u32 %v387, 8388608
        %v389 = vsub.s32 0, %v388
        %v390 = vadd.s32 %v385, 1
        %vm391 = vcmp.gt.s32.totalorder %v390, 0
        %v392 = vsel %vm391, %v390, 0
        %v393 = vshrl.u32 %v392, 5
        %v394 = vand.u32 %v392, 31
        %v395 = vsub.s32 32, %v394
        %v396 = vshrl.u32 683565275, %v395
        %v397 = vshll.u32 683565275, %v394
        %v398 = vshrl.u32 2475754826, %v395
        %v399 = vor.u32 %v397, %v398
        %v400 = vshll.u32 2475754826, %v394
        %v401 = vshrl.u32 2131351028, %v395
        %v402 = vor.u32 %v400, %v401
        %v403 = vshll.u32 2131351028, %v394
        %v404 = vshrl.u32 2102212464, %v395
        %v405 = vor.u32 %v403, %v404
        %v406 = vshll.u32 2102212464, %v394
        %v407 = vshrl.u32 920167782, %v395
        %v408 = vor.u32 %v406, %v407
        %v409 = vshll.u32 920167782, %v394
        %v410 = vshrl.u32 1326507024, %v395
        %v411 = vor.u32 %v409, %v410
        %vm412 = vcmp.lt.s32.totalorder %v393, 1
        %vm413 = vcmp.lt.s32.totalorder %v393, 2
        %vm414 = vcmp.lt.s32.totalorder %v393, 3
        %vm415 = vcmp.lt.s32.totalorder %v393, 4
        %v416 = vsel %vm412, %v396, %v399
        %v417 = vsel %vm415, %v405, 2102212464
        %v418 = vsel %vm414, %v402, %v417
        %v419 = vsel %vm413, %v416, %v418
        %v420 = vsel %vm412, %v399, %v402
        %v421 = vsel %vm415, %v408, 920167782
        %v422 = vsel %vm414, %v405, %v421
        %v423 = vsel %vm413, %v420, %v422
        %v424 = vsel %vm412, %v402, %v405
        %v425 = vsel %vm415, %v411, 1326507024
        %v426 = vsel %vm414, %v408, %v425
        %v427 = vsel %vm413, %v424, %v426
        %v428 = vshll.u32 %v388, 8
        %v429 = vmul.u32.u64.compose %v428, %v427
        %v430 = vextract.low.u32 %v429
        %v431 = vextract.high.u32 %v429
        %v432 = vmul.u32.u64.compose %v428, %v423
        %v433 = vextract.low.u32 %v432
        %v434 = vextract.high.u32 %v432
        %v435 = vmul.u32 %v428, %v419
        %v436 = vadd.s32 %v431, %v433
        %vm437 = vc.u32 %v431, %v433
        %v438 = vadd.s32 %v434, 1
        %v439 = vsel %vm437, %v438, %v434
        %v440 = vadd.s32 %v435, %v439
        %v441 = vadd.s32 %v440, 536870912
        %v442 = vshrl.u32 %v441, 30
        %v443 = vshll.u32 %v442, 30
        %v444 = vsub.s32 %v440, %v443
        %vm445 = vcmp.lt.s32.totalorder %v444, 0
        %v446 = vsub.s32 0, %v444
        %v447 = vsel %vm445, %v446, %v444
        %v448 = vclz %v447
        %v449 = vsub.s32 %v448, 2
        %vm450 = vcmp.gt.s32.totalorder 0, %v449
        %v451 = vsel %vm450, 0, %v449
        %v452 = vsub.s32 32, %v451
        %v453 = vshll.u32 %v444, %v451
        %v454 = vshrl.u32 %v436, %v452
        %v455 = vor.u32 %v453, %v454
        %v456 = vsub.s32 4294967266, %v451
        %v457 = vadd.s32 %v456, 127
        %v458 = vshll.u32 %v457, 23
        %v459 = vor.u32 4788187, %v458
        %v460 = vand.u32 2147483647, %v459
        %v462 = vcvt.s32.f32 %v455
        %v463 = vmul.f32 %v462, %v460
        %v464 = vxor.u32 %v463, 2147483648
        %v465 = vsel %vm382, %v464, %v463
        %v466 = vsub.s32 4, %v442
        %v467 = vsel %vm382, %v466, %v442
        %v468 = vsel %vm381, %v276, %v465
        %v469 = vsel %vm381, 0, %v467
        %v470 = vcosq.f32.pop %v468
        %v471 = vsinq.f32.pop %v468
        %vm472 = vweird.f32 %v276
        %v473 = vand.u32 %v469, 3
        %vm474 = vcmp.lt.s32.totalorder %v473, 2
        %vm475 = vcmp.eq.s32.totalorder %v473, 0
        %v476 = vxor.u32 %v471, 2147483648
        %v477 = vsel %vm475, %v470, %v476
        %vm478 = vcmp.eq.s32.totalorder %v473, 2
        %v479 = vxor.u32 %v470, 2147483648
        %v480 = vsel %vm478, %v479, %v471
        %v481 = vsel %vm474, %v477, %v480
        %v482 = vsel %vm472, nan, %v481
        %v483 = vand.u32 2147483647, %v275
        %vm484 = vcmp.le.f32.partialorder %v483, 0.7853982
        %vm485 = vcmp.lt.s32.totalorder %v275, 0
        %v486 = vand.u32 %v275, 2139095040
        %v487 = vshrl.u32 %v486, 23
        %v488 = vsub.s32 %v487, 127
        %v489 = vand.u32 2147483647, %v275
        %v490 = vand.u32 %v489, 8388607
        %v491 = vor.u32 %v490, 8388608
        %v492 = vsub.s32 0, %v491
        %v493 = vadd.s32 %v488, 1
        %vm494 = vcmp.gt.s32.totalorder %v493, 0
        %v495 = vsel %vm494, %v493, 0
        %v496 = vshrl.u32 %v495, 5
        %v497 = vand.u32 %v495, 31
        %v498 = vsub.s32 32, %v497
        %v499 = vshrl.u32 683565275, %v498
        %v500 = vshll.u32 683565275, %v497
        %v501 = vshrl.u32 2475754826, %v498
        %v502 = vor.u32 %v500, %v501
        %v503 = vshll.u32 2475754826, %v497
        %v504 = vshrl.u32 2131351028, %v498
        %v505 = vor.u32 %v503, %v504
        %v506 = vshll.u32 2131351028, %v497
        %v507 = vshrl.u32 2102212464, %v498
        %v508 = vor.u32 %v506, %v507
        %v509 = vshll.u32 2102212464, %v497
        %v510 = vshrl.u32 920167782, %v498
        %v511 = vor.u32 %v509, %v510
        %v512 = vshll.u32 920167782, %v497
        %v513 = vshrl.u32 1326507024, %v498
        %v514 = vor.u32 %v512, %v513
        %vm515 = vcmp.lt.s32.totalorder %v496, 1
        %vm516 = vcmp.lt.s32.totalorder %v496, 2
        %vm517 = vcmp.lt.s32.totalorder %v496, 3
        %vm518 = vcmp.lt.s32.totalorder %v496, 4
        %v519 = vsel %vm515, %v499, %v502
        %v520 = vsel %vm518, %v508, 2102212464
        %v521 = vsel %vm517, %v505, %v520
        %v522 = vsel %vm516, %v519, %v521
        %v523 = vsel %vm515, %v502, %v505
        %v524 = vsel %vm518, %v511, 920167782
        %v525 = vsel %vm517, %v508, %v524
        %v526 = vsel %vm516, %v523, %v525
        %v527 = vsel %vm515, %v505, %v508
        %v528 = vsel %vm518, %v514, 1326507024
        %v529 = vsel %vm517, %v511, %v528
        %v530 = vsel %vm516, %v527, %v529
        %v531 = vshll.u32 %v491, 8
        %v532 = vmul.u32.u64.compose %v531, %v530
        %v533 = vextract.low.u32 %v532
        %v534 = vextract.high.u32 %v532
        %v535 = vmul.u32.u64.compose %v531, %v526
        %v536 = vextract.low.u32 %v535
        %v537 = vextract.high.u32 %v535
        %v538 = vmul.u32 %v531, %v522
        %v539 = vadd.s32 %v534, %v536
        %vm540 = vc.u32 %v534, %v536
        %v541 = vadd.s32 %v537, 1
        %v542 = vsel %vm540, %v541, %v537
        %v543 = vadd.s32 %v538, %v542
        %v544 = vadd.s32 %v543, 536870912
        %v545 = vshrl.u32 %v544, 30
        %v546 = vshll.u32 %v545, 30
        %v547 = vsub.s32 %v543, %v546
        %vm548 = vcmp.lt.s32.totalorder %v547, 0
        %v549 = vsub.s32 0, %v547
        %v550 = vsel %vm548, %v549, %v547
        %v551 = vclz %v550
        %v552 = vsub.s32 %v551, 2
        %vm553 = vcmp.gt.s32.totalorder 0, %v552
        %v554 = vsel %vm553, 0, %v552
        %v555 = vsub.s32 32, %v554
        %v556 = vshll.u32 %v547, %v554
        %v557 = vshrl.u32 %v539, %v555
        %v558 = vor.u32 %v556, %v557
        %v559 = vsub.s32 4294967266, %v554
        %v560 = vadd.s32 %v559, 127
        %v561 = vshll.u32 %v560, 23
        %v562 = vor.u32 4788187, %v561
        %v563 = vand.u32 2147483647, %v562
        %v565 = vcvt.s32.f32 %v558
        %v566 = vmul.f32 %v565, %v563
        %v567 = vxor.u32 %v566, 2147483648
        %v568 = vsel %vm485, %v567, %v566
        %v569 = vsub.s32 4, %v545
        %v570 = vsel %vm485, %v569, %v545
        %v571 = vsel %vm484, %v275, %v568
        %v572 = vsel %vm484, 0, %v570
        %v573 = vcosq.f32.pop %v571
        %v574 = vsinq.f32.pop %v571
        %vm575 = vweird.f32 %v275
        %v576 = vadd.s32 %v572, 3
        %v577 = vand.u32 %v576, 3
        %vm578 = vcmp.lt.s32.totalorder %v577, 2
        %vm579 = vcmp.eq.s32.totalorder %v577, 0
        %v580 = vxor.u32 %v574, 2147483648
        %v581 = vsel %vm579, %v573, %v580
        %vm582 = vcmp.eq.s32.totalorder %v577, 2
        %v583 = vxor.u32 %v573, 2147483648
        %v584 = vsel %vm582, %v583, %v574
        %v585 = vsel %vm578, %v581, %v584
        %v586 = vsel %vm575, nan, %v585
        %v587 = vand.u32 2147483647, %v276
        %vm588 = vcmp.le.f32.partialorder %v587, 0.7853982
        %vm589 = vcmp.lt.s32.totalorder %v276, 0
        %v590 = vand.u32 %v276, 2139095040
        %v591 = vshrl.u32 %v590, 23
        %v592 = vsub.s32 %v591, 127
        %v593 = vand.u32 2147483647, %v276
        %v594 = vand.u32 %v593, 8388607
        %v595 = vor.u32 %v594, 8388608
        %v596 = vsub.s32 0, %v595
        %v597 = vadd.s32 %v592, 1
        %vm598 = vcmp.gt.s32.totalorder %v597, 0
        %v599 = vsel %vm598, %v597, 0
        %v600 = vshrl.u32 %v599, 5
        %v601 = vand.u32 %v599, 31
        %v602 = vsub.s32 32, %v601
        %v603 = vshrl.u32 683565275, %v602
        %v604 = vshll.u32 683565275, %v601
        %v605 = vshrl.u32 2475754826, %v602
        %v606 = vor.u32 %v604, %v605
        %v607 = vshll.u32 2475754826, %v601
        %v608 = vshrl.u32 2131351028, %v602
        %v609 = vor.u32 %v607, %v608
        %v610 = vshll.u32 2131351028, %v601
        %v611 = vshrl.u32 2102212464, %v602
        %v612 = vor.u32 %v610, %v611
        %v613 = vshll.u32 2102212464, %v601
        %v614 = vshrl.u32 920167782, %v602
        %v615 = vor.u32 %v613, %v614
        %v616 = vshll.u32 920167782, %v601
        %v617 = vshrl.u32 1326507024, %v602
        %v618 = vor.u32 %v616, %v617
        %vm619 = vcmp.lt.s32.totalorder %v600, 1
        %vm620 = vcmp.lt.s32.totalorder %v600, 2
        %vm621 = vcmp.lt.s32.totalorder %v600, 3
        %vm622 = vcmp.lt.s32.totalorder %v600, 4
        %v623 = vsel %vm619, %v603, %v606
        %v624 = vsel %vm622, %v612, 2102212464
        %v625 = vsel %vm621, %v609, %v624
        %v626 = vsel %vm620, %v623, %v625
        %v627 = vsel %vm619, %v606, %v609
        %v628 = vsel %vm622, %v615, 920167782
        %v629 = vsel %vm621, %v612, %v628
        %v630 = vsel %vm620, %v627, %v629
        %v631 = vsel %vm619, %v609, %v612
        %v632 = vsel %vm622, %v618, 1326507024
        %v633 = vsel %vm621, %v615, %v632
        %v634 = vsel %vm620, %v631, %v633
        %v635 = vshll.u32 %v595, 8
        %v636 = vmul.u32.u64.compose %v635, %v634
        %v637 = vextract.low.u32 %v636
        %v638 = vextract.high.u32 %v636
        %v639 = vmul.u32.u64.compose %v635, %v630
        %v640 = vextract.low.u32 %v639
        %v641 = vextract.high.u32 %v639
        %v642 = vmul.u32 %v635, %v626
        %v643 = vadd.s32 %v638, %v640
        %vm644 = vc.u32 %v638, %v640
        %v645 = vadd.s32 %v641, 1
        %v646 = vsel %vm644, %v645, %v641
        %v647 = vadd.s32 %v642, %v646
        %v648 = vadd.s32 %v647, 536870912
        %v649 = vshrl.u32 %v648, 30
        %v650 = vshll.u32 %v649, 30
        %v651 = vsub.s32 %v647, %v650
        %vm652 = vcmp.lt.s32.totalorder %v651, 0
        %v653 = vsub.s32 0, %v651
        %v654 = vsel %vm652, %v653, %v651
        %v655 = vclz %v654
        %v656 = vsub.s32 %v655, 2
        %vm657 = vcmp.gt.s32.totalorder 0, %v656
        %v658 = vsel %vm657, 0, %v656
        %v659 = vsub.s32 32, %v658
        %v660 = vshll.u32 %v651, %v658
        %v661 = vshrl.u32 %v643, %v659
        %v662 = vor.u32 %v660, %v661
        %v663 = vsub.s32 4294967266, %v658
        %v664 = vadd.s32 %v663, 127
        %v665 = vshll.u32 %v664, 23
        %v666 = vor.u32 4788187, %v665
        %v667 = vand.u32 2147483647, %v666
        %v669 = vcvt.s32.f32 %v662
        %v670 = vmul.f32 %v669, %v667
        %v671 = vxor.u32 %v670, 2147483648
        %v672 = vsel %vm589, %v671, %v670
        %v673 = vsub.s32 4, %v649
        %v674 = vsel %vm589, %v673, %v649
        %v675 = vsel %vm588, %v276, %v672
        %v676 = vsel %vm588, 0, %v674
        %v677 = vcosq.f32.pop %v675
        %v678 = vsinq.f32.pop %v675
        %vm679 = vweird.f32 %v276
        %v680 = vadd.s32 %v676, 3
        %v681 = vand.u32 %v680, 3
        %vm682 = vcmp.lt.s32.totalorder %v681, 2
        %vm683 = vcmp.eq.s32.totalorder %v681, 0
        %v684 = vxor.u32 %v678, 2147483648
        %v685 = vsel %vm683, %v677, %v684
        %vm686 = vcmp.eq.s32.totalorder %v681, 2
        %v687 = vxor.u32 %v677, 2147483648
        %v688 = vsel %vm686, %v687, %v678
        %v689 = vsel %vm682, %v685, %v688
        %v690 = vsel %vm679, nan, %v689
        %s691 = sld [smem:[#allocation8 + $0x2]]
        %v692 = vstv %s691
        %v693 = vmul.f32 %v692, %v379
        %v694 = vmul.f32 %v692, %v482
        %s695 = sld [smem:[#allocation8 + $0x9]]
        %v696 = vstv %s695
        %v697 = vmul.f32 %v696, %v586
        %v698 = vmul.f32 %v696, %v690
        %v699 = vadd.f32 %v693, %v697
        %v700 = vadd.f32 %v694, %v698
        %v701 = vmul.f32 %v379, %v379
        %v702 = vmul.f32 %v482, %v482
        %v703 = vmul.f32 %v586, %v586
        %v704 = vmul.f32 %v690, %v690
        %v705 = vsub.f32 %v701, %v703
        %v706 = vsub.f32 %v702, %v704
        %v707 = vmul.f32 %v586, %v379
        %v708 = vmul.f32 %v690, %v482
        %v709 = vadd.f32 %v707, %v707
        %v710 = vadd.f32 %v708, %v708
        %s711 = sld [smem:[#allocation8 + $0x3]]
        %v712 = vstv %s711
        %v713 = vmul.f32 %v712, %v705
        %v714 = vmul.f32 %v712, %v706
        %v715 = vadd.f32 %v699, %v713
        %v716 = vadd.f32 %v700, %v714
        %s717 = sld [smem:[#allocation8 + $0xa]]
        %v718 = vstv %s717
        %v719 = vmul.f32 %v718, %v709
        %v720 = vmul.f32 %v718, %v710
        %v721 = vadd.f32 %v715, %v719
        %v722 = vadd.f32 %v716, %v720
        %v723 = vmul.f32 %v705, %v379
        %v724 = vmul.f32 %v706, %v482
        %v725 = vmul.f32 %v709, %v586
        %v726 = vmul.f32 %v710, %v690
        %v727 = vsub.f32 %v723, %v725
        %v728 = vsub.f32 %v724, %v726
        %v729 = vmul.f32 %v709, %v379
        %v730 = vmul.f32 %v710, %v482
        %v731 = vmul.f32 %v705, %v586
        %v732 = vmul.f32 %v706, %v690
        %v733 = vadd.f32 %v729, %v731
        %v734 = vadd.f32 %v730, %v732
        %s735 = sld [smem:[#allocation8 + $0x4]]
        %v736 = vstv %s735
        %v737 = vmul.f32 %v736, %v727
        %v738 = vmul.f32 %v736, %v728
        %v739 = vadd.f32 %v721, %v737
        %v740 = vadd.f32 %v722, %v738
        %s741 = sld [smem:[#allocation8 + $0xb]]
        %v742 = vstv %s741
        %v743 = vmul.f32 %v742, %v733
        %v744 = vmul.f32 %v742, %v734
        %v745 = vadd.f32 %v739, %v743
        %v746 = vadd.f32 %v740, %v744
        %v747 = vmul.f32 %v727, %v379
        %v748 = vmul.f32 %v728, %v482
        %v749 = vmul.f32 %v733, %v586
        %v750 = vmul.f32 %v734, %v690
        %v751 = vsub.f32 %v747, %v749
        %v752 = vsub.f32 %v748, %v750
        %v753 = vmul.f32 %v733, %v379
        %v754 = vmul.f32 %v734, %v482
        %v755 = vmul.f32 %v727, %v586
        %v756 = vmul.f32 %v728, %v690
        %v757 = vadd.f32 %v753, %v755
        %v758 = vadd.f32 %v754, %v756
        %s759 = sld [smem:[#allocation8 + $0x5]]
        %v760 = vstv %s759
        %v761 = vmul.f32 %v760, %v751
        %v762 = vmul.f32 %v760, %v752
        %v763 = vadd.f32 %v745, %v761
        %v764 = vadd.f32 %v746, %v762
        %s765 = sld [smem:[#allocation8 + $0xc]]
        %v766 = vstv %s765
        %v767 = vmul.f32 %v766, %v757
        %v768 = vmul.f32 %v766, %v758
        %v769 = vadd.f32 %v763, %v767
        %v770 = vadd.f32 %v764, %v768
        %v771 = vmul.f32 %v751, %v379
        %v772 = vmul.f32 %v752, %v482
        %v773 = vmul.f32 %v757, %v586
        %v774 = vmul.f32 %v758, %v690
        %v775 = vsub.f32 %v771, %v773
        %v776 = vsub.f32 %v772, %v774
        %v777 = vmul.f32 %v757, %v379
        %v778 = vmul.f32 %v758, %v482
        %v779 = vmul.f32 %v751, %v586
        %v780 = vmul.f32 %v752, %v690
        %v781 = vadd.f32 %v777, %v779
        %v782 = vadd.f32 %v778, %v780
        %s783 = sld [smem:[#allocation8 + $0x6]]
        %v784 = vstv %s783
        %v785 = vmul.f32 %v784, %v775
        %v786 = vmul.f32 %v784, %v776
        %v787 = vadd.f32 %v769, %v785
        %v788 = vadd.f32 %v770, %v786
        %s789 = sld [smem:[#allocation8 + $0xd]]
        %v790 = vstv %s789
        %v791 = vmul.f32 %v790, %v781
        %v792 = vmul.f32 %v790, %v782
        %v793 = vadd.f32 %v787, %v791
        %v794 = vadd.f32 %v788, %v792
        %v795 = vmul.f32 %v775, %v379
        %v796 = vmul.f32 %v776, %v482
        %v797 = vmul.f32 %v781, %v586
        %v798 = vmul.f32 %v782, %v690
        %v799 = vsub.f32 %v795, %v797
        %v800 = vsub.f32 %v796, %v798
        %v801 = vmul.f32 %v781, %v379
        %v802 = vmul.f32 %v782, %v482
        %v803 = vmul.f32 %v775, %v586
        %v804 = vmul.f32 %v776, %v690
        %v805 = vadd.f32 %v801, %v803
        %v806 = vadd.f32 %v802, %v804
        %s807 = sld [smem:[#allocation8 + $0x7]]
        %v808 = vstv %s807
        %v809 = vmul.f32 %v808, %v799
        %v810 = vmul.f32 %v808, %v800
        %v811 = vadd.f32 %v793, %v809
        %v812 = vadd.f32 %v794, %v810
        %s813 = sld [smem:[#allocation8 + $0xe]]
        %v814 = vstv %s813
        %v815 = vmul.f32 %v814, %v805
        %v816 = vmul.f32 %v814, %v806
        %v817 = vadd.f32 %v811, %v815
        %v818 = vadd.f32 %v812, %v816
        %v819 = vmul.f32 %v799, %v379
        %v820 = vmul.f32 %v800, %v482
        %v821 = vmul.f32 %v805, %v586
        %v822 = vmul.f32 %v806, %v690
        %v823 = vsub.f32 %v819, %v821
        %v824 = vsub.f32 %v820, %v822
        %v825 = vmul.f32 %v805, %v379
        %v826 = vmul.f32 %v806, %v482
        %v827 = vmul.f32 %v799, %v586
        %v828 = vmul.f32 %v800, %v690
        %v829 = vadd.f32 %v825, %v827
        %v830 = vadd.f32 %v826, %v828
        %s831 = sld [smem:[#allocation8 + $0x8]]
        %v832 = vstv %s831
        %v833 = vmul.f32 %v832, %v823
        %v834 = vmul.f32 %v832, %v824
        %v835 = vadd.f32 %v817, %v833
        %v836 = vadd.f32 %v818, %v834
        %s837 = sld [smem:[#allocation8 + $0xf]]
        %v838 = vstv %s837
        %v839 = vmul.f32 %v838, %v829
        %v840 = vmul.f32 %v838, %v830
        %v841 = vadd.f32 %v835, %v839
        %v842 = vadd.f32 %v836, %v840
        %s843 = sld [smem:[#allocation8 + $0x1]]
        %v844 = vstv %s843
        %v845 = vmul.f32 %v271, %v844
        %v846 = vmul.f32 %v272, %v844
        %v847 = vand.u32 2147483647, %v845
        %vm848 = vcmp.le.f32.partialorder %v847, 0.7853982
        %vm849 = vcmp.lt.s32.totalorder %v845, 0
        %v850 = vand.u32 %v845, 2139095040
        %v851 = vshrl.u32 %v850, 23
        %v852 = vsub.s32 %v851, 127
        %v853 = vand.u32 2147483647, %v845
        %v854 = vand.u32 %v853, 8388607
        %v855 = vor.u32 %v854, 8388608
        %v856 = vsub.s32 0, %v855
        %v857 = vadd.s32 %v852, 1
        %vm858 = vcmp.gt.s32.totalorder %v857, 0
        %v859 = vsel %vm858, %v857, 0
        %v860 = vshrl.u32 %v859, 5
        %v861 = vand.u32 %v859, 31
        %v862 = vsub.s32 32, %v861
        %v863 = vshrl.u32 683565275, %v862
        %v864 = vshll.u32 683565275, %v861
        %v865 = vshrl.u32 2475754826, %v862
        %v866 = vor.u32 %v864, %v865
        %v867 = vshll.u32 2475754826, %v861
        %v868 = vshrl.u32 2131351028, %v862
        %v869 = vor.u32 %v867, %v868
        %v870 = vshll.u32 2131351028, %v861
        %v871 = vshrl.u32 2102212464, %v862
        %v872 = vor.u32 %v870, %v871
        %v873 = vshll.u32 2102212464, %v861
        %v874 = vshrl.u32 920167782, %v862
        %v875 = vor.u32 %v873, %v874
        %v876 = vshll.u32 920167782, %v861
        %v877 = vshrl.u32 1326507024, %v862
        %v878 = vor.u32 %v876, %v877
        %vm879 = vcmp.lt.s32.totalorder %v860, 1
        %vm880 = vcmp.lt.s32.totalorder %v860, 2
        %vm881 = vcmp.lt.s32.totalorder %v860, 3
        %vm882 = vcmp.lt.s32.totalorder %v860, 4
        %v883 = vsel %vm879, %v863, %v866
        %v884 = vsel %vm882, %v872, 2102212464
        %v885 = vsel %vm881, %v869, %v884
        %v886 = vsel %vm880, %v883, %v885
        %v887 = vsel %vm879, %v866, %v869
        %v888 = vsel %vm882, %v875, 920167782
        %v889 = vsel %vm881, %v872, %v888
        %v890 = vsel %vm880, %v887, %v889
        %v891 = vsel %vm879, %v869, %v872
        %v892 = vsel %vm882, %v878, 1326507024
        %v893 = vsel %vm881, %v875, %v892
        %v894 = vsel %vm880, %v891, %v893
        %v895 = vshll.u32 %v855, 8
        %v896 = vmul.u32.u64.compose %v895, %v894
        %v897 = vextract.low.u32 %v896
        %v898 = vextract.high.u32 %v896
        %v899 = vmul.u32.u64.compose %v895, %v890
        %v900 = vextract.low.u32 %v899
        %v901 = vextract.high.u32 %v899
        %v902 = vmul.u32 %v895, %v886
        %v903 = vadd.s32 %v898, %v900
        %vm904 = vc.u32 %v898, %v900
        %v905 = vadd.s32 %v901, 1
        %v906 = vsel %vm904, %v905, %v901
        %v907 = vadd.s32 %v902, %v906
        %v908 = vadd.s32 %v907, 536870912
        %v909 = vshrl.u32 %v908, 30
        %v910 = vshll.u32 %v909, 30
        %v911 = vsub.s32 %v907, %v910
        %vm912 = vcmp.lt.s32.totalorder %v911, 0
        %v913 = vsub.s32 0, %v911
        %v914 = vsel %vm912, %v913, %v911
        %v915 = vclz %v914
        %v916 = vsub.s32 %v915, 2
        %vm917 = vcmp.gt.s32.totalorder 0, %v916
        %v918 = vsel %vm917, 0, %v916
        %v919 = vsub.s32 32, %v918
        %v920 = vshll.u32 %v911, %v918
        %v921 = vshrl.u32 %v903, %v919
        %v922 = vor.u32 %v920, %v921
        %v923 = vsub.s32 4294967266, %v918
        %v924 = vadd.s32 %v923, 127
        %v925 = vshll.u32 %v924, 23
        %v926 = vor.u32 4788187, %v925
        %v927 = vand.u32 2147483647, %v926
        %v929 = vcvt.s32.f32 %v922
        %v930 = vmul.f32 %v929, %v927
        %v931 = vxor.u32 %v930, 2147483648
        %v932 = vsel %vm849, %v931, %v930
        %v933 = vsub.s32 4, %v909
        %v934 = vsel %vm849, %v933, %v909
        %v935 = vsel %vm848, %v845, %v932
        %v936 = vsel %vm848, 0, %v934
        %v937 = vcosq.f32.pop %v935
        %v938 = vsinq.f32.pop %v935
        %vm939 = vweird.f32 %v845
        %v940 = vand.u32 %v936, 3
        %vm941 = vcmp.lt.s32.totalorder %v940, 2
        %vm942 = vcmp.eq.s32.totalorder %v940, 0
        %v943 = vxor.u32 %v938, 2147483648
        %v944 = vsel %vm942, %v937, %v943
        %vm945 = vcmp.eq.s32.totalorder %v940, 2
        %v946 = vxor.u32 %v937, 2147483648
        %v947 = vsel %vm945, %v946, %v938
        %v948 = vsel %vm941, %v944, %v947
        %v949 = vsel %vm939, nan, %v948
        %v950 = vand.u32 2147483647, %v846
        %vm951 = vcmp.le.f32.partialorder %v950, 0.7853982
        %vm952 = vcmp.lt.s32.totalorder %v846, 0
        %v953 = vand.u32 %v846, 2139095040
        %v954 = vshrl.u32 %v953, 23
        %v955 = vsub.s32 %v954, 127
        %v956 = vand.u32 2147483647, %v846
        %v957 = vand.u32 %v956, 8388607
        %v958 = vor.u32 %v957, 8388608
        %v959 = vsub.s32 0, %v958
        %v960 = vadd.s32 %v955, 1
        %vm961 = vcmp.gt.s32.totalorder %v960, 0
        %v962 = vsel %vm961, %v960, 0
        %v963 = vshrl.u32 %v962, 5
        %v964 = vand.u32 %v962, 31
        %v965 = vsub.s32 32, %v964
        %v966 = vshrl.u32 683565275, %v965
        %v967 = vshll.u32 683565275, %v964
        %v968 = vshrl.u32 2475754826, %v965
        %v969 = vor.u32 %v967, %v968
        %v970 = vshll.u32 2475754826, %v964
        %v971 = vshrl.u32 2131351028, %v965
        %v972 = vor.u32 %v970, %v971
        %v973 = vshll.u32 2131351028, %v964
        %v974 = vshrl.u32 2102212464, %v965
        %v975 = vor.u32 %v973, %v974
        %v976 = vshll.u32 2102212464, %v964
        %v977 = vshrl.u32 920167782, %v965
        %v978 = vor.u32 %v976, %v977
        %v979 = vshll.u32 920167782, %v964
        %v980 = vshrl.u32 1326507024, %v965
        %v981 = vor.u32 %v979, %v980
        %vm982 = vcmp.lt.s32.totalorder %v963, 1
        %vm983 = vcmp.lt.s32.totalorder %v963, 2
        %vm984 = vcmp.lt.s32.totalorder %v963, 3
        %vm985 = vcmp.lt.s32.totalorder %v963, 4
        %v986 = vsel %vm982, %v966, %v969
        %v987 = vsel %vm985, %v975, 2102212464
        %v988 = vsel %vm984, %v972, %v987
        %v989 = vsel %vm983, %v986, %v988
        %v990 = vsel %vm982, %v969, %v972
        %v991 = vsel %vm985, %v978, 920167782
        %v992 = vsel %vm984, %v975, %v991
        %v993 = vsel %vm983, %v990, %v992
        %v994 = vsel %vm982, %v972, %v975
        %v995 = vsel %vm985, %v981, 1326507024
        %v996 = vsel %vm984, %v978, %v995
        %v997 = vsel %vm983, %v994, %v996
        %v998 = vshll.u32 %v958, 8
        %v999 = vmul.u32.u64.compose %v998, %v997
        %v1000 = vextract.low.u32 %v999
        %v1001 = vextract.high.u32 %v999
        %v1002 = vmul.u32.u64.compose %v998, %v993
        %v1003 = vextract.low.u32 %v1002
        %v1004 = vextract.high.u32 %v1002
        %v1005 = vmul.u32 %v998, %v989
        %v1006 = vadd.s32 %v1001, %v1003
        %vm1007 = vc.u32 %v1001, %v1003
        %v1008 = vadd.s32 %v1004, 1
        %v1009 = vsel %vm1007, %v1008, %v1004
        %v1010 = vadd.s32 %v1005, %v1009
        %v1011 = vadd.s32 %v1010, 536870912
        %v1012 = vshrl.u32 %v1011, 30
        %v1013 = vshll.u32 %v1012, 30
        %v1014 = vsub.s32 %v1010, %v1013
        %vm1015 = vcmp.lt.s32.totalorder %v1014, 0
        %v1016 = vsub.s32 0, %v1014
        %v1017 = vsel %vm1015, %v1016, %v1014
        %v1018 = vclz %v1017
        %v1019 = vsub.s32 %v1018, 2
        %vm1020 = vcmp.gt.s32.totalorder 0, %v1019
        %v1021 = vsel %vm1020, 0, %v1019
        %v1022 = vsub.s32 32, %v1021
        %v1023 = vshll.u32 %v1014, %v1021
        %v1024 = vshrl.u32 %v1006, %v1022
        %v1025 = vor.u32 %v1023, %v1024
        %v1026 = vsub.s32 4294967266, %v1021
        %v1027 = vadd.s32 %v1026, 127
        %v1028 = vshll.u32 %v1027, 23
        %v1029 = vor.u32 4788187, %v1028
        %v1030 = vand.u32 2147483647, %v1029
        %v1032 = vcvt.s32.f32 %v1025
        %v1033 = vmul.f32 %v1032, %v1030
        %v1034 = vxor.u32 %v1033, 2147483648
        %v1035 = vsel %vm952, %v1034, %v1033
        %v1036 = vsub.s32 4, %v1012
        %v1037 = vsel %vm952, %v1036, %v1012
        %v1038 = vsel %vm951, %v846, %v1035
        %v1039 = vsel %vm951, 0, %v1037
        %v1040 = vcosq.f32.pop %v1038
        %v1041 = vsinq.f32.pop %v1038
        %vm1042 = vweird.f32 %v846
        %v1043 = vand.u32 %v1039, 3
        %vm1044 = vcmp.lt.s32.totalorder %v1043, 2
        %vm1045 = vcmp.eq.s32.totalorder %v1043, 0
        %v1046 = vxor.u32 %v1041, 2147483648
        %v1047 = vsel %vm1045, %v1040, %v1046
        %vm1048 = vcmp.eq.s32.totalorder %v1043, 2
        %v1049 = vxor.u32 %v1040, 2147483648
        %v1050 = vsel %vm1048, %v1049, %v1041
        %v1051 = vsel %vm1044, %v1047, %v1050
        %v1052 = vsel %vm1042, nan, %v1051
        %v1053 = vand.u32 2147483647, %v845
        %vm1054 = vcmp.le.f32.partialorder %v1053, 0.7853982
        %vm1055 = vcmp.lt.s32.totalorder %v845, 0
        %v1056 = vand.u32 %v845, 2139095040
        %v1057 = vshrl.u32 %v1056, 23
        %v1058 = vsub.s32 %v1057, 127
        %v1059 = vand.u32 2147483647, %v845
        %v1060 = vand.u32 %v1059, 8388607
        %v1061 = vor.u32 %v1060, 8388608
        %v1062 = vsub.s32 0, %v1061
        %v1063 = vadd.s32 %v1058, 1
        %vm1064 = vcmp.gt.s32.totalorder %v1063, 0
        %v1065 = vsel %vm1064, %v1063, 0
        %v1066 = vshrl.u32 %v1065, 5
        %v1067 = vand.u32 %v1065, 31
        %v1068 = vsub.s32 32, %v1067
        %v1069 = vshrl.u32 683565275, %v1068
        %v1070 = vshll.u32 683565275, %v1067
        %v1071 = vshrl.u32 2475754826, %v1068
        %v1072 = vor.u32 %v1070, %v1071
        %v1073 = vshll.u32 2475754826, %v1067
        %v1074 = vshrl.u32 2131351028, %v1068
        %v1075 = vor.u32 %v1073, %v1074
        %v1076 = vshll.u32 2131351028, %v1067
        %v1077 = vshrl.u32 2102212464, %v1068
        %v1078 = vor.u32 %v1076, %v1077
        %v1079 = vshll.u32 2102212464, %v1067
        %v1080 = vshrl.u32 920167782, %v1068
        %v1081 = vor.u32 %v1079, %v1080
        %v1082 = vshll.u32 920167782, %v1067
        %v1083 = vshrl.u32 1326507024, %v1068
        %v1084 = vor.u32 %v1082, %v1083
        %vm1085 = vcmp.lt.s32.totalorder %v1066, 1
        %vm1086 = vcmp.lt.s32.totalorder %v1066, 2
        %vm1087 = vcmp.lt.s32.totalorder %v1066, 3
        %vm1088 = vcmp.lt.s32.totalorder %v1066, 4
        %v1089 = vsel %vm1085, %v1069, %v1072
        %v1090 = vsel %vm1088, %v1078, 2102212464
        %v1091 = vsel %vm1087, %v1075, %v1090
        %v1092 = vsel %vm1086, %v1089, %v1091
        %v1093 = vsel %vm1085, %v1072, %v1075
        %v1094 = vsel %vm1088, %v1081, 920167782
        %v1095 = vsel %vm1087, %v1078, %v1094
        %v1096 = vsel %vm1086, %v1093, %v1095
        %v1097 = vsel %vm1085, %v1075, %v1078
        %v1098 = vsel %vm1088, %v1084, 1326507024
        %v1099 = vsel %vm1087, %v1081, %v1098
        %v1100 = vsel %vm1086, %v1097, %v1099
        %v1101 = vshll.u32 %v1061, 8
        %v1102 = vmul.u32.u64.compose %v1101, %v1100
        %v1103 = vextract.low.u32 %v1102
        %v1104 = vextract.high.u32 %v1102
        %v1105 = vmul.u32.u64.compose %v1101, %v1096
        %v1106 = vextract.low.u32 %v1105
        %v1107 = vextract.high.u32 %v1105
        %v1108 = vmul.u32 %v1101, %v1092
        %v1109 = vadd.s32 %v1104, %v1106
        %vm1110 = vc.u32 %v1104, %v1106
        %v1111 = vadd.s32 %v1107, 1
        %v1112 = vsel %vm1110, %v1111, %v1107
        %v1113 = vadd.s32 %v1108, %v1112
        %v1114 = vadd.s32 %v1113, 536870912
        %v1115 = vshrl.u32 %v1114, 30
        %v1116 = vshll.u32 %v1115, 30
        %v1117 = vsub.s32 %v1113, %v1116
        %vm1118 = vcmp.lt.s32.totalorder %v1117, 0
        %v1119 = vsub.s32 0, %v1117
        %v1120 = vsel %vm1118, %v1119, %v1117
        %v1121 = vclz %v1120
        %v1122 = vsub.s32 %v1121, 2
        %vm1123 = vcmp.gt.s32.totalorder 0, %v1122
        %v1124 = vsel %vm1123, 0, %v1122
        %v1125 = vsub.s32 32, %v1124
        %v1126 = vshll.u32 %v1117, %v1124
        %v1127 = vshrl.u32 %v1109, %v1125
        %v1128 = vor.u32 %v1126, %v1127
        %v1129 = vsub.s32 4294967266, %v1124
        %v1130 = vadd.s32 %v1129, 127
        %v1131 = vshll.u32 %v1130, 23
        %v1132 = vor.u32 4788187, %v1131
        %v1133 = vand.u32 2147483647, %v1132
        %v1135 = vcvt.s32.f32 %v1128
        %v1136 = vmul.f32 %v1135, %v1133
        %v1137 = vxor.u32 %v1136, 2147483648
        %v1138 = vsel %vm1055, %v1137, %v1136
        %v1139 = vsub.s32 4, %v1115
        %v1140 = vsel %vm1055, %v1139, %v1115
        %v1141 = vsel %vm1054, %v845, %v1138
        %v1142 = vsel %vm1054, 0, %v1140
        %v1143 = vcosq.f32.pop %v1141
        %v1144 = vsinq.f32.pop %v1141
        %vm1145 = vweird.f32 %v845
        %v1146 = vadd.s32 %v1142, 3
        %v1147 = vand.u32 %v1146, 3
        %vm1148 = vcmp.lt.s32.totalorder %v1147, 2
        %vm1149 = vcmp.eq.s32.totalorder %v1147, 0
        %v1150 = vxor.u32 %v1144, 2147483648
        %v1151 = vsel %vm1149, %v1143, %v1150
        %vm1152 = vcmp.eq.s32.totalorder %v1147, 2
        %v1153 = vxor.u32 %v1143, 2147483648
        %v1154 = vsel %vm1152, %v1153, %v1144
        %v1155 = vsel %vm1148, %v1151, %v1154
        %v1156 = vsel %vm1145, nan, %v1155
        %v1157 = vand.u32 2147483647, %v846
        %vm1158 = vcmp.le.f32.partialorder %v1157, 0.7853982
        %vm1159 = vcmp.lt.s32.totalorder %v846, 0
        %v1160 = vand.u32 %v846, 2139095040
        %v1161 = vshrl.u32 %v1160, 23
        %v1162 = vsub.s32 %v1161, 127
        %v1163 = vand.u32 2147483647, %v846
        %v1164 = vand.u32 %v1163, 8388607
        %v1165 = vor.u32 %v1164, 8388608
        %v1166 = vsub.s32 0, %v1165
        %v1167 = vadd.s32 %v1162, 1
        %vm1168 = vcmp.gt.s32.totalorder %v1167, 0
        %v1169 = vsel %vm1168, %v1167, 0
        %v1170 = vshrl.u32 %v1169, 5
        %v1171 = vand.u32 %v1169, 31
        %v1172 = vsub.s32 32, %v1171
        %v1173 = vshrl.u32 683565275, %v1172
        %v1174 = vshll.u32 683565275, %v1171
        %v1175 = vshrl.u32 2475754826, %v1172
        %v1176 = vor.u32 %v1174, %v1175
        %v1177 = vshll.u32 2475754826, %v1171
        %v1178 = vshrl.u32 2131351028, %v1172
        %v1179 = vor.u32 %v1177, %v1178
        %v1180 = vshll.u32 2131351028, %v1171
        %v1181 = vshrl.u32 2102212464, %v1172
        %v1182 = vor.u32 %v1180, %v1181
        %v1183 = vshll.u32 2102212464, %v1171
        %v1184 = vshrl.u32 920167782, %v1172
        %v1185 = vor.u32 %v1183, %v1184
        %v1186 = vshll.u32 920167782, %v1171
        %v1187 = vshrl.u32 1326507024, %v1172
        %v1188 = vor.u32 %v1186, %v1187
        %vm1189 = vcmp.lt.s32.totalorder %v1170, 1
        %vm1190 = vcmp.lt.s32.totalorder %v1170, 2
        %vm1191 = vcmp.lt.s32.totalorder %v1170, 3
        %vm1192 = vcmp.lt.s32.totalorder %v1170, 4
        %v1193 = vsel %vm1189, %v1173, %v1176
        %v1194 = vsel %vm1192, %v1182, 2102212464
        %v1195 = vsel %vm1191, %v1179, %v1194
        %v1196 = vsel %vm1190, %v1193, %v1195
        %v1197 = vsel %vm1189, %v1176, %v1179
        %v1198 = vsel %vm1192, %v1185, 920167782
        %v1199 = vsel %vm1191, %v1182, %v1198
        %v1200 = vsel %vm1190, %v1197, %v1199
        %v1201 = vsel %vm1189, %v1179, %v1182
        %v1202 = vsel %vm1192, %v1188, 1326507024
        %v1203 = vsel %vm1191, %v1185, %v1202
        %v1204 = vsel %vm1190, %v1201, %v1203
        %v1205 = vshll.u32 %v1165, 8
        %v1206 = vmul.u32.u64.compose %v1205, %v1204
        %v1207 = vextract.low.u32 %v1206
        %v1208 = vextract.high.u32 %v1206
        %v1209 = vmul.u32.u64.compose %v1205, %v1200
        %v1210 = vextract.low.u32 %v1209
        %v1211 = vextract.high.u32 %v1209
        %v1212 = vmul.u32 %v1205, %v1196
        %v1213 = vadd.s32 %v1208, %v1210
        %vm1214 = vc.u32 %v1208, %v1210
        %v1215 = vadd.s32 %v1211, 1
        %v1216 = vsel %vm1214, %v1215, %v1211
        %v1217 = vadd.s32 %v1212, %v1216
        %v1218 = vadd.s32 %v1217, 536870912
        %v1219 = vshrl.u32 %v1218, 30
        %v1220 = vshll.u32 %v1219, 30
        %v1221 = vsub.s32 %v1217, %v1220
        %vm1222 = vcmp.lt.s32.totalorder %v1221, 0
        %v1223 = vsub.s32 0, %v1221
        %v1224 = vsel %vm1222, %v1223, %v1221
        %v1225 = vclz %v1224
        %v1226 = vsub.s32 %v1225, 2
        %vm1227 = vcmp.gt.s32.totalorder 0, %v1226
        %v1228 = vsel %vm1227, 0, %v1226
        %v1229 = vsub.s32 32, %v1228
        %v1230 = vshll.u32 %v1221, %v1228
        %v1231 = vshrl.u32 %v1213, %v1229
        %v1232 = vor.u32 %v1230, %v1231
        %v1233 = vsub.s32 4294967266, %v1228
        %v1234 = vadd.s32 %v1233, 127
        %v1235 = vshll.u32 %v1234, 23
        %v1236 = vor.u32 4788187, %v1235
        %v1237 = vand.u32 2147483647, %v1236
        %v1239 = vcvt.s32.f32 %v1232
        %v1240 = vmul.f32 %v1239, %v1237
        %v1241 = vxor.u32 %v1240, 2147483648
        %v1242 = vsel %vm1159, %v1241, %v1240
        %v1243 = vsub.s32 4, %v1219
        %v1244 = vsel %vm1159, %v1243, %v1219
        %v1245 = vsel %vm1158, %v846, %v1242
        %v1246 = vsel %vm1158, 0, %v1244
        %v1247 = vcosq.f32.pop %v1245
        %v1248 = vsinq.f32.pop %v1245
        %vm1249 = vweird.f32 %v846
        %v1250 = vadd.s32 %v1246, 3
        %v1251 = vand.u32 %v1250, 3
        %vm1252 = vcmp.lt.s32.totalorder %v1251, 2
        %vm1253 = vcmp.eq.s32.totalorder %v1251, 0
        %v1254 = vxor.u32 %v1248, 2147483648
        %v1255 = vsel %vm1253, %v1247, %v1254
        %vm1256 = vcmp.eq.s32.totalorder %v1251, 2
        %v1257 = vxor.u32 %v1247, 2147483648
        %v1258 = vsel %vm1256, %v1257, %v1248
        %v1259 = vsel %vm1252, %v1255, %v1258
        %v1260 = vsel %vm1249, nan, %v1259
        %s1261 = sld [smem:[#allocation8 + $0x10]]
        %v1262 = vstv %s1261
        %v1263 = vmul.f32 %v1262, %v949
        %v1264 = vmul.f32 %v1262, %v1052
        %s1265 = sld [smem:[#allocation8 + $0x15]]
        %v1266 = vstv %s1265
        %v1267 = vmul.f32 %v1266, %v1156
        %v1268 = vmul.f32 %v1266, %v1260
        %v1269 = vadd.f32 %v1263, %v1267
        %v1270 = vadd.f32 %v1264, %v1268
        %v1271 = vmul.f32 %v949, %v949
        %v1272 = vmul.f32 %v1052, %v1052
        %v1273 = vmul.f32 %v1156, %v1156
        %v1274 = vmul.f32 %v1260, %v1260
        %v1275 = vsub.f32 %v1271, %v1273
        %v1276 = vsub.f32 %v1272, %v1274
        %v1277 = vmul.f32 %v1156, %v949
        %v1278 = vmul.f32 %v1260, %v1052
        %v1279 = vadd.f32 %v1277, %v1277
        %v1280 = vadd.f32 %v1278, %v1278
        %s1281 = sld [smem:[#allocation8 + $0x11]]
        %v1282 = vstv %s1281
        %v1283 = vmul.f32 %v1282, %v1275
        %v1284 = vmul.f32 %v1282, %v1276
        %v1285 = vadd.f32 %v1269, %v1283
        %v1286 = vadd.f32 %v1270, %v1284
        %s1287 = sld [smem:[#allocation8 + $0x16]]
        %v1288 = vstv %s1287
        %v1289 = vmul.f32 %v1288, %v1279
        %v1290 = vmul.f32 %v1288, %v1280
        %v1291 = vadd.f32 %v1285, %v1289
        %v1292 = vadd.f32 %v1286, %v1290
        %v1293 = vmul.f32 %v1275, %v949
        %v1294 = vmul.f32 %v1276, %v1052
        %v1295 = vmul.f32 %v1279, %v1156
        %v1296 = vmul.f32 %v1280, %v1260
        %v1297 = vsub.f32 %v1293, %v1295
        %v1298 = vsub.f32 %v1294, %v1296
        %v1299 = vmul.f32 %v1279, %v949
        %v1300 = vmul.f32 %v1280, %v1052
        %v1301 = vmul.f32 %v1275, %v1156
        %v1302 = vmul.f32 %v1276, %v1260
        %v1303 = vadd.f32 %v1299, %v1301
        %v1304 = vadd.f32 %v1300, %v1302
        %s1305 = sld [smem:[#allocation8 + $0x12]]
        %v1306 = vstv %s1305
        %v1307 = vmul.f32 %v1306, %v1297
        %v1308 = vmul.f32 %v1306, %v1298
        %v1309 = vadd.f32 %v1291, %v1307
        %v1310 = vadd.f32 %v1292, %v1308
        %s1311 = sld [smem:[#allocation8 + $0x17]]
        %v1312 = vstv %s1311
        %v1313 = vmul.f32 %v1312, %v1303
        %v1314 = vmul.f32 %v1312, %v1304
        %v1315 = vadd.f32 %v1309, %v1313
        %v1316 = vadd.f32 %v1310, %v1314
        %v1317 = vmul.f32 %v1297, %v949
        %v1318 = vmul.f32 %v1298, %v1052
        %v1319 = vmul.f32 %v1303, %v1156
        %v1320 = vmul.f32 %v1304, %v1260
        %v1321 = vsub.f32 %v1317, %v1319
        %v1322 = vsub.f32 %v1318, %v1320
        %v1323 = vmul.f32 %v1303, %v949
        %v1324 = vmul.f32 %v1304, %v1052
        %v1325 = vmul.f32 %v1297, %v1156
        %v1326 = vmul.f32 %v1298, %v1260
        %v1327 = vadd.f32 %v1323, %v1325
        %v1328 = vadd.f32 %v1324, %v1326
        %s1329 = sld [smem:[#allocation8 + $0x13]]
        %v1330 = vstv %s1329
        %v1331 = vmul.f32 %v1330, %v1321
        %v1332 = vmul.f32 %v1330, %v1322
        %v1333 = vadd.f32 %v1315, %v1331
        %v1334 = vadd.f32 %v1316, %v1332
        %s1335 = sld [smem:[#allocation8 + $0x18]]
        %v1336 = vstv %s1335
        %v1337 = vmul.f32 %v1336, %v1327
        %v1338 = vmul.f32 %v1336, %v1328
        %v1339 = vadd.f32 %v1333, %v1337
        %v1340 = vadd.f32 %v1334, %v1338
        %v1341 = vmul.f32 %v1321, %v949
        %v1342 = vmul.f32 %v1322, %v1052
        %v1343 = vmul.f32 %v1327, %v1156
        %v1344 = vmul.f32 %v1328, %v1260
        %v1345 = vsub.f32 %v1341, %v1343
        %v1346 = vsub.f32 %v1342, %v1344
        %v1347 = vmul.f32 %v1327, %v949
        %v1348 = vmul.f32 %v1328, %v1052
        %v1349 = vmul.f32 %v1321, %v1156
        %v1350 = vmul.f32 %v1322, %v1260
        %v1351 = vadd.f32 %v1347, %v1349
        %v1352 = vadd.f32 %v1348, %v1350
        %s1353 = sld [smem:[#allocation8 + $0x14]]
        %v1354 = vstv %s1353
        %v1355 = vmul.f32 %v1354, %v1345
        %v1356 = vmul.f32 %v1354, %v1346
        %v1357 = vadd.f32 %v1339, %v1355
        %v1358 = vadd.f32 %v1340, %v1356
        %s1359 = sld [smem:[#allocation8 + $0x19]]
        %v1360 = vstv %s1359
        %v1361 = vmul.f32 %v1360, %v1351
        %v1362 = vmul.f32 %v1360, %v1352
        %v1363 = vadd.f32 %v1357, %v1361
        %v1364 = vadd.f32 %v1358, %v1362
        %v1365 = vadd.f32 %v841, %v1363
        %v1366 = vadd.f32 %v842, %v1364
        %s1367 = sld [smem:[#allocation8 + $0x1a]]
        %v1368 = vld [vmem:[%s235] sm:$0xff]
        %v1369 = vld [vmem:[%s235 + $0x8] sm:$0xff]
        %v1370 = vstv %s1367
        %v1371 = vmul.f32 %v1370, %v1368
        %v1372 = vmul.f32 %v1370, %v1369
        %s1373 = sld [smem:[#allocation8 + $0x1b]]
        %s1374 = scalar_lea.vmem %s235, 16 [#allocation6]
        %v1375 = vld [vmem:[%s1374] sm:$0xff]
        %v1376 = vld [vmem:[%s1374 + $0x8] sm:$0xff]
        %v1377 = vstv %s1373
        %v1378 = vmul.f32 %v1377, %v1375
        %v1379 = vmul.f32 %v1377, %v1376
        %v1380 = vadd.f32 %v1371, %v1378
        %v1381 = vadd.f32 %v1372, %v1379
        %s1382 = sld [smem:[#allocation8 + $0x1c]]
        %s1383 = scalar_lea.vmem %s235, 32 [#allocation6]
        %v1384 = vld [vmem:[%s1383] sm:$0xff]
        %v1385 = vld [vmem:[%s1383 + $0x8] sm:$0xff]
        %v1386 = vstv %s1382
        %v1387 = vmul.f32 %v1386, %v1384
        %v1388 = vmul.f32 %v1386, %v1385
        %v1389 = vadd.f32 %v1380, %v1387
        %v1390 = vadd.f32 %v1381, %v1388
        %s1391 = sld [smem:[#allocation8 + $0x1d]]
        %s1392 = scalar_lea.vmem %s235, 48 [#allocation6]
        %v1393 = vld [vmem:[%s1392] sm:$0xff]
        %v1394 = vld [vmem:[%s1392 + $0x8] sm:$0xff]
        %v1395 = vstv %s1391
        %v1396 = vmul.f32 %v1395, %v1393
        %v1397 = vmul.f32 %v1395, %v1394
        %v1398 = vadd.f32 %v1389, %v1396
        %v1399 = vadd.f32 %v1390, %v1397
        %v1400 = vadd.f32 %v1365, %v1398
        %v1401 = vadd.f32 %v1366, %v1399
        %s1402 = sld [smem:[#allocation8 + $0x1e]]
        %v1403 = vstv %s1402
        %v1404 = vmul.f32 %v1403, %v271
        %v1405 = vmul.f32 %v1403, %v272
        %v1406 = vadd.f32 %v1400, %v1404
        %v1407 = vadd.f32 %v1401, %v1405
        %s1408 = sld [smem:[#allocation8 + $0x1f]]
        %v1409 = vstv %s1408
        %v1410 = vadd.f32 %v1406, %v1409
        %v1411 = vadd.f32 %v1407, %v1409
        %vm1412 = vcmp.lt.f32.partialorder %v1410, -0.5
        %vm1413 = vcmp.lt.f32.partialorder %v1411, -0.5
        %v1414 = vsub.f32 %v1410, -0.5
        %v1415 = vsub.f32 %v1411, -0.5
        %v1416 = vmul.f32 %v1414, 0.01
        %v1417 = vmul.f32 %v1415, 0.01
        %v1418 = vadd.f32 %v1416, -0.5
        %v1419 = vadd.f32 %v1417, -0.5
        %v1420 = vsel %vm1412, %v1418, %v1410
        %v1421 = vsel %vm1413, %v1419, %v1411
        %vm1422 = vcmp.gt.f32.partialorder %v1420, 0.5
        %vm1423 = vcmp.gt.f32.partialorder %v1421, 0.5
        %v1424 = vsub.f32 %v1420, 0.5
        %v1425 = vsub.f32 %v1421, 0.5
        %v1426 = vmul.f32 %v1424, 0.01
        %v1427 = vmul.f32 %v1425, 0.01
        %v1428 = vadd.f32 %v1426, 0.5
        %v1429 = vadd.f32 %v1427, 0.5
        %v1430 = vsel %vm1422, %v1428, %v1420
        %v1431 = vsel %vm1423, %v1429, %v1421
        %1432 = vst [vmem:[%s267] sm:$0xff] %v1430
        %1433 = vst [vmem:[%s267 + $0x8] sm:$0xff] %v1431
        %s1434 = sand.u32 %s105, 1
        %s1435 = scalar_lea.sflag [#allocation4], %s1434
        %s1436 = sand.u32 %s105, 1
        %s1437 = smul.addr %s1436, 16
        %s1438 = scalar_lea.vmem [#allocation9], %s1437
        // Predicated region
        $region45: #{tpu_custom_call.1} parent=31 // pred_check
          %p1439 = pneg %p115
        $region46: #{tpu_custom_call.1} parent=31 // pred_check_branch
          %1441 = sbr.rel (%p1439) target = $region48
        $region47: #{tpu_custom_call.1} parent=31 // pred_region
          %s1442 = smul.u32 2, %s24
          %s1444 = ssub.s32 256, 256
          %1445 = vsyncadd %s1435, %s1444
          %s1446 = smul.addr %s1442, 128
          %s1447 = scalar_lea.hbm %s3, %s1446
          %s1448 = sshll.u32 %s1438, 4
          %s1449 = int_to_ptr.vmem [resolvable:$true] %s1448
          %1454 = dma.vmem_to_hbm [thread:$0]  %s1449, 256, %s1447, %s1435, 128, 128, 8
        $region48: #{tpu_custom_call.1} parent=31 // pred_fallthru
          _
      $region32: #{tpu_custom_call.1} parent=5 // pred_fallthru
        _
      %p1455 = scmp.le.s32.totalorder 2, %s19
      // Predicated region
      $region49: #{tpu_custom_call.1} parent=5 // pred_check
        %p1456 = pneg %p1455
      $region50: #{tpu_custom_call.1} parent=5 // pred_check_branch
        %1458 = sbr.rel (%p1456) target = $region52
      $region51: #{tpu_custom_call.1} parent=5 // pred_region
        %s1459 = ssub.s32 %s19, 2
        // Predicated region
        $region53: #{tpu_custom_call.1} parent=51 // pred_check
          %p1460 = pneg %p121
        $region54: #{tpu_custom_call.1} parent=51 // pred_check_branch
          %1462 = sbr.rel (%p1460) target = $region56
        $region55: #{tpu_custom_call.1} parent=51 // pred_region
          %s1463 = sand.u32 %s106, 1
          %s1464 = scalar_lea.sflag [#allocation4], %s1463
          %s1465 = sand.u32 %s106, 1
          %s1466 = smul.addr %s1465, 16
          %s1467 = scalar_lea.vmem [#allocation9], %s1466
          %1468 = dma.done %s1464, 256
        $region56: #{tpu_custom_call.1} parent=51 // pred_fallthru
          _
      $region52: #{tpu_custom_call.1} parent=5 // pred_fallthru
        _
    $region6: #{tpu_custom_call.1} parent=1 // loop_footer
      %s23 = sadd.s32 1, %s19
    $region7: #{tpu_custom_call.1} parent=1 // loop_footer_branch
      %18 = sbr.rel target = $region3
    $region8: #{tpu_custom_call.1} parent=1 // loop_exit
      _
    %1469 = vsyncpa [#allocation3], 1
    %s1470 = scalar_lea.sflag [#allocation3], 1
    %1471 = vsyncpa %s1470, 1
    %1472 = vsyncpa [#allocation7], 1
    %s1473 = scalar_lea.sflag [#allocation7], 1
    %1474 = vsyncpa %s1473, 1
    %1475 = vsyncpa [#allocation4], 1
    %s1476 = scalar_lea.sflag [#allocation4], 1
    %1477 = vsyncpa %s1476, 1
    %1478 = vsyncpa [#allocation5], 1
    %s1479 = scalar_lea.sflag [#allocation5], 1
    %1480 = vsyncpa %s1479, 1

</llo_original>
